<compile_context>
chip_gen: v7x
topology: tpu7x:2x2x1
jax: 0.10.0
libtpu: 0.0.40
codegen_flags: <defaults>
</compile_context>

<pallas_src>
import jax
import jax.numpy as jnp
from jax.experimental import pallas as pl
from jax.experimental.pallas import tpu as pltpu

EPS = 1e-5  # BatchNorm1d default eps


# ----------------------------------------------------------------------------
# Fused kernel: LSTM1 ∥ LSTM2 (skewed wavefronts) -> folded BN/Linear head.
# ----------------------------------------------------------------------------
def fused_lstm_kernel(x_ref,        # (T*BP, F+1)  time-major, ones column for b1
                      w1_ref,       # (F+1, 4H)    layer-1 input weight (+bias row)
                      wbig_ref,     # (3H, 8H)     block-diag [w_hh1|0 ; 0|w_ih2 ; 0|w_hh2]
                      bias2_ref,    # (T*BP, 4H)   b2 + sh1[t]*colsum(w_ih2^T), batch-bcast
                      sc1_ref,      # (T,)  SMEM   BN1 scale per timestep
                      whead_ref,    # (H, 1)       folded BN2+Linear3+output weight
                      bhead_ref,    # (1,)  SMEM   folded head bias
                      o_ref,        # (BP, 1)
                      gx_ref):      # (T*BP, 4H)   VMEM scratch
    T = sc1_ref.shape[0]
    BP = o_ref.shape[0]
    H = whead_ref.shape[0]
    G = 4 * H

    # Layer-1 input projection (+ bias via ones column) for ALL timesteps in one
    # MXU op, off the serial recurrence path.  Kept in VMEM scratch.
    gx_ref[...] = jnp.dot(x_ref[...], w1_ref[...],
                          preferred_element_type=jnp.float32)

    # Load the fused recurrent weight once; stays resident for the whole loop.
    w_big = wbig_ref[...]

    def cell(g, c):
        # Activate the full (BP, 4H) gate vreg once, then lane-slice (2 EUP passes
        # instead of 4); gate order is PyTorch's (i, f, g, o).
        s = jax.nn.sigmoid(g)
        th = jnp.tanh(g)
        i = s[:, 0 * H:1 * H]
        f = s[:, 1 * H:2 * H]
        gg = th[:, 2 * H:3 * H]
        o = s[:, 3 * H:4 * H]
        c_new = f * c + i * gg
        h_new = o * jnp.tanh(c_new)
        return h_new, c_new

    zeros = jnp.zeros((BP, H), jnp.float32)
    h1, c1, h2, c2, y1s = zeros, zeros, zeros, zeros, zeros

    # Skewed two-layer recurrence: wavefront w advances layer-1 step w and
    # layer-2 step w-1 with a single block-diagonal matmul.
    for w in range(T + 1):
        row = jnp.concatenate([h1, y1s, h2], axis=1)                 # (BP, 3H)
        gb = jnp.dot(row, w_big, preferred_element_type=jnp.float32)  # (BP, 8H)

        if w >= 1:   # layer-2, step w-1 (BN1 shift already in bias2 table)
            g2 = gb[:, G:2 * G] + bias2_ref[(w - 1) * BP:w * BP, :]
            h2, c2 = cell(g2, c2)

        if w < T:    # layer-1, step w
            g1 = gb[:, 0:G] + gx_ref[w * BP:(w + 1) * BP, :]
            h1, c1 = cell(g1, c1)
            y1s = h1 * sc1_ref[w]          # BN1 scale (shift folded into bias2)

    # Head: BN2(last step) -> Linear(H,16) -> Linear(16,1) folded into one affine.
    o_ref[...] = (jnp.dot(h2, whead_ref[...], preferred_element_type=jnp.float32)
                  + bhead_ref[0])


# ----------------------------------------------------------------------------
# One-time parameter preparation (outside jit): fold BN stats, transpose,
# build the block-diagonal recurrent weight and the folded head affine.
# ----------------------------------------------------------------------------
def prepare_params(p, window, padded_batch=8):
    T = window
    H = p['w_hh1'].shape[1]

    # Eval-mode BatchNorm1d(window) -> per-timestep scalar affine.
    sc1 = p['bn1_gamma'] * jax.lax.rsqrt(p['bn1_var'] + EPS)
    sh1 = p['bn1_beta'] - p['bn1_mean'] * sc1
    sc2 = p['bn2_gamma'] * jax.lax.rsqrt(p['bn2_var'] + EPS)
    sh2 = p['bn2_beta'] - p['bn2_mean'] * sc2

    # Layer-1 input weight with b1 folded in via a ones column on x.
    w_ih1_aug = jnp.concatenate([p['w_ih1'].T, p['b1'][None, :]], axis=0)  # (F+1,4H)

    # Block-diagonal fused recurrent weight: rows [h1 | y1 | h2] -> cols [g1 | g2].
    z = jnp.zeros((H, 4 * H), jnp.float32)
    w_big = jnp.concatenate([
        jnp.concatenate([p['w_hh1'].T, z], axis=1),
        jnp.concatenate([z, p['w_ih2'].T], axis=1),
        jnp.concatenate([z, p['w_hh2'].T], axis=1),
    ], axis=0)                                                             # (3H, 8H)

    # Layer-2 per-step bias with BN1 shift folded in, pre-broadcast over batch.
    colsum2 = p['w_ih2'].T.sum(axis=0)                                     # (4H,)
    bias2_t = p['b2'][None, :] + sh1[:, None] * colsum2[None, :]           # (T, 4H)
    bias2x = jnp.broadcast_to(bias2_t[:, None, :],
                              (T, padded_batch, 4 * H)).reshape(T * padded_batch, 4 * H)

    # Folded head: out = BN2(h2) @ w3.T @ wo.T + (b3 @ wo.T + bo)
    #            = h2 @ (sc2[T-1] * w3.T @ wo.T) + (b3 @ wo.T + bo + sh2[T-1]*sum(.))
    wh = p['w3'].T @ p['wo'].T                                             # (H, 1)
    bh = p['b3'] @ p['wo'].T + p['bo']                                     # (1,)
    w_head = sc2[T - 1] * wh                                               # (H, 1)
    b_head = (bh + sh2[T - 1] * wh.sum()).reshape(1)                       # (1,)

    return dict(w_ih1_aug=w_ih1_aug, w_big=w_big, bias2x=bias2x,
                sc1=sc1, w_head=w_head, b_head=b_head)


# ----------------------------------------------------------------------------
# Jitted forward: pad batch to 8 sublanes, flatten time-major, single fused call.
# ----------------------------------------------------------------------------
def lstm_simple_forward(prep, x):
    # x: (B, T, 11) batch_first, as in PyTorch.
    B, T, F = x.shape
    H = prep['w_head'].shape[0]
    BP = prep['bias2x'].shape[0] // T      # padded batch (multiple of 8 sublanes)

    # Pad batch; append the ones column that carries the layer-1 bias.
    x_pad = jnp.zeros((BP, T, F + 1), jnp.float32)
    x_pad = x_pad.at[:B, :, :F].set(x)
    x_pad = x_pad.at[:, :, F].set(1.0)
    # Time-major flatten so per-step rows are contiguous: row = t*BP + b.
    x_aug = jnp.transpose(x_pad, (1, 0, 2)).reshape(T * BP, F + 1)

    vmem = pl.BlockSpec(memory_space=pltpu.MemorySpace.VMEM)
    smem = pl.BlockSpec(memory_space=pltpu.MemorySpace.SMEM)

    out = pl.pallas_call(
        fused_lstm_kernel,
        out_shape=jax.ShapeDtypeStruct((BP, 1), jnp.float32),
        in_specs=[vmem,          # x_aug
                  vmem,          # w_ih1_aug
                  vmem,          # w_big
                  vmem,          # bias2x
                  smem,          # sc1
                  vmem,          # w_head
                  smem],         # b_head
        out_specs=vmem,
        scratch_shapes=[pltpu.VMEM((T * BP, 4 * H), jnp.float32)],
    )(x_aug, prep['w_ih1_aug'], prep['w_big'], prep['bias2x'],
      prep['sc1'], prep['w_head'], prep['b_head'])

    return out[:B]   # drop padded rows


# ----------------------------------------------------------------------------
# Deterministic parameter init (mirrors nn.LSTM / nn.Linear / nn.BatchNorm1d shapes).
# ----------------------------------------------------------------------------
def init_params(key, window, cells, in_feat=11):
    H = cells
    ks = jax.random.split(key, 20)

    def u(k, shape, bound):
        return jax.random.uniform(k, shape, jnp.float32, -bound, bound)

    s = 1.0 / float(H) ** 0.5
    return dict(
        # lstm1
        w_ih1=u(ks[0], (4 * H, in_feat), s),
        w_hh1=u(ks[1], (4 * H, H), s),
        b1=u(ks[2], (4 * H,), s) + u(ks[3], (4 * H,), s),   # b_ih + b_hh
        # lstm2
        w_ih2=u(ks[4], (4 * H, H), s),
        w_hh2=u(ks[5], (4 * H, H), s),
        b2=u(ks[6], (4 * H,), s) + u(ks[7], (4 * H,), s),
        # batchnorm1 (num_features = window)
        bn1_gamma=1.0 + 0.1 * jax.random.normal(ks[8], (window,), jnp.float32),
        bn1_beta=0.1 * jax.random.normal(ks[9], (window,), jnp.float32),
        bn1_mean=0.1 * jax.random.normal(ks[10], (window,), jnp.float32),
        bn1_var=1.0 + 0.5 * jax.random.uniform(ks[11], (window,), jnp.float32),
        # batchnorm2
        bn2_gamma=1.0 + 0.1 * jax.random.normal(ks[12], (window,), jnp.float32),
        bn2_beta=0.1 * jax.random.normal(ks[13], (window,), jnp.float32),
        bn2_mean=0.1 * jax.random.normal(ks[14], (window,), jnp.float32),
        bn2_var=1.0 + 0.5 * jax.random.uniform(ks[15], (window,), jnp.float32),
        # linear3 (H -> 16) and output (16 -> 1)
        w3=u(ks[16], (16, H), s),
        b3=u(ks[17], (16,), s),
        wo=u(ks[18], (1, 16), 0.25),
        bo=u(ks[19], (1,), 0.25),
    )


# ----------------------------------------------------------------------------
# Pure-JAX reference (raw params, no folding) for the correctness check.
# ----------------------------------------------------------------------------
def _lstm_ref(x, w_ih, w_hh, b):
    B = x.shape[0]
    H = w_hh.shape[1]

    def step(carry, x_t):
        h, c = carry
        g = x_t @ w_ih.T + h @ w_hh.T + b
        i, f, gg, o = jnp.split(g, 4, axis=-1)
        c = jax.nn.sigmoid(f) * c + jax.nn.sigmoid(i) * jnp.tanh(gg)
        h = jax.nn.sigmoid(o) * jnp.tanh(c)
        return (h, c), h

    init = (jnp.zeros((B, H), jnp.float32), jnp.zeros((B, H), jnp.float32))
    _, ys = jax.lax.scan(step, init, jnp.transpose(x, (1, 0, 2)))
    return jnp.transpose(ys, (1, 0, 2))


def reference_forward(params, x):
    p = params
    y = _lstm_ref(x, p['w_ih1'], p['w_hh1'], p['b1'])
    y = ((y - p['bn1_mean'][None, :, None])
         / jnp.sqrt(p['bn1_var'] + EPS)[None, :, None]
         * p['bn1_gamma'][None, :, None] + p['bn1_beta'][None, :, None])
    y = _lstm_ref(y, p['w_ih2'], p['w_hh2'], p['b2'])
    y = ((y - p['bn2_mean'][None, :, None])
         / jnp.sqrt(p['bn2_var'] + EPS)[None, :, None]
         * p['bn2_gamma'][None, :, None] + p['bn2_beta'][None, :, None])
    y = y[:, -1, :]
    y = y @ p['w3'].T + p['b3']
    y = y @ p['wo'].T + p['bo']
    return y


if __name__ == "__main__":
    window, cells, dropout = 8, 32, 0.1   # LSTMSimple(window=8, cells=32, dropout=0.1)
    B = 2                                  # dropout layers are identity (inference)

    key = jax.random.PRNGKey(0)
    kp, kx = jax.random.split(key)
    params = init_params(kp, window, cells)
    x = jax.random.normal(kx, (B, window, 11), jnp.float32)

    prep = prepare_params(params, window, padded_batch=8)   # one-time, outside jit
    fwd = jax.jit(lstm_simple_forward)
    out = jax.block_until_ready(fwd(prep, x))

    ref = reference_forward(params, x)
    assert out.shape == (B, 1), out.shape
    assert jnp.allclose(out, ref, atol=1e-4, rtol=1e-4), (out, ref)
    print("KERNEL_OK")
</pallas_src>

<mosaic_0001>
module attributes {stable_mosaic.version = 11 : i64} {
  func.func @fused_lstm_kernel(%arg0: memref<64x12xf32, #tpu.memory_space<vmem>>, %arg1: memref<12x128xf32, #tpu.memory_space<vmem>>, %arg2: memref<96x256xf32, #tpu.memory_space<vmem>>, %arg3: memref<64x128xf32, #tpu.memory_space<vmem>>, %arg4: memref<8xf32, #tpu.memory_space<smem>>, %arg5: memref<32x1xf32, #tpu.memory_space<vmem>>, %arg6: memref<1xf32, #tpu.memory_space<smem>>, %arg7: memref<8x1xf32, #tpu.memory_space<vmem>>, %arg8: memref<64x128xf32, #tpu.memory_space<vmem>>) attributes {dimension_semantics = [], scalar_prefetch = 0 : i64, scratch_operands = 1 : i64, tpu.core_type = #tpu.core_type<tc>} {
    %c0 = arith.constant 0 : index
    %c0_0 = arith.constant 0 : index
    %0 = vector.load %arg0[%c0, %c0_0] : memref<64x12xf32, #tpu.memory_space<vmem>>, vector<64x12xf32>
    %c0_1 = arith.constant 0 : index
    %c0_2 = arith.constant 0 : index
    %1 = vector.load %arg1[%c0_1, %c0_2] : memref<12x128xf32, #tpu.memory_space<vmem>>, vector<12x128xf32>
    %cst = arith.constant dense<0.000000e+00> : vector<64x128xf32>
    %2 = tpu.matmul %0, %1, %cst {dimension_numbers = #tpu.dot_dimension_numbers<[1], [0], [0], [1], [0, 0, 1, 1], [], []>} : vector<64x12xf32>, vector<12x128xf32>, vector<64x128xf32> -> vector<64x128xf32>
    %c0_3 = arith.constant 0 : index
    %c0_4 = arith.constant 0 : index
    %3 = vector.load %arg8[%c0_3, %c0_4] : memref<64x128xf32, #tpu.memory_space<vmem>>, vector<64x128xf32>
    tpu.vector_store %arg8[%c0_3, %c0_4], %2 {strides = array<i32>} : memref<64x128xf32, #tpu.memory_space<vmem>>, vector<64x128xf32>,
    %c0_5 = arith.constant 0 : index
    %c0_6 = arith.constant 0 : index
    %4 = vector.load %arg2[%c0_5, %c0_6] : memref<96x256xf32, #tpu.memory_space<vmem>>, vector<96x256xf32>
    %cst_7 = arith.constant 0.000000e+00 : f32
    %5 = vector.broadcast %cst_7 : f32 to vector<8x32xf32>
    %6 = tpu.concatenate %5, %5, %5 in 1 : vector<8x32xf32>, vector<8x32xf32>, vector<8x32xf32> -> vector<8x96xf32>
    %cst_8 = arith.constant dense<0.000000e+00> : vector<8x256xf32>
    %7 = tpu.matmul %6, %4, %cst_8 {dimension_numbers = #tpu.dot_dimension_numbers<[1], [0], [0], [1], [0, 0, 1, 1], [], []>} : vector<8x96xf32>, vector<96x256xf32>, vector<8x256xf32> -> vector<8x256xf32>
    %8 = vector.extract_strided_slice %7 {offsets = [0, 0], sizes = [8, 128], strides = [1, 1]} : vector<8x256xf32> to vector<8x128xf32>
    %c0_9 = arith.constant 0 : index
    %c0_10 = arith.constant 0 : index
    %9 = vector.load %arg8[%c0_9, %c0_10] : memref<64x128xf32, #tpu.memory_space<vmem>>, vector<8x128xf32>
    %10 = arith.addf %8, %9 : vector<8x128xf32>
    %11 = arith.negf %10 : vector<8x128xf32>
    %12 = math.exp %11 : vector<8x128xf32>
    %cst_11 = arith.constant 1.000000e+00 : f32
    %13 = vector.broadcast %cst_11 : f32 to vector<8x128xf32>
    %14 = arith.addf %13, %12 : vector<8x128xf32>
    %15 = arith.divf %13, %14 : vector<8x128xf32>
    %16 = math.tanh %10 : vector<8x128xf32>
    %17 = vector.extract_strided_slice %15 {offsets = [0, 0], sizes = [8, 32], strides = [1, 1]} : vector<8x128xf32> to vector<8x32xf32>
    %18 = vector.extract_strided_slice %15 {offsets = [0, 32], sizes = [8, 32], strides = [1, 1]} : vector<8x128xf32> to vector<8x32xf32>
    %19 = vector.extract_strided_slice %16 {offsets = [0, 64], sizes = [8, 32], strides = [1, 1]} : vector<8x128xf32> to vector<8x32xf32>
    %20 = vector.extract_strided_slice %15 {offsets = [0, 96], sizes = [8, 32], strides = [1, 1]} : vector<8x128xf32> to vector<8x32xf32>
    %21 = arith.mulf %18, %5 : vector<8x32xf32>
    %22 = arith.mulf %17, %19 : vector<8x32xf32>
    %23 = arith.addf %21, %22 : vector<8x32xf32>
    %24 = math.tanh %23 : vector<8x32xf32>
    %25 = arith.mulf %20, %24 : vector<8x32xf32>
    %c0_12 = arith.constant 0 : index
    %26 = memref.load %arg4[%c0_12] : memref<8xf32, #tpu.memory_space<smem>>
    %27 = vector.broadcast %26 : f32 to vector<8x32xf32>
    %28 = arith.mulf %25, %27 : vector<8x32xf32>
    %29 = tpu.concatenate %25, %28, %5 in 1 : vector<8x32xf32>, vector<8x32xf32>, vector<8x32xf32> -> vector<8x96xf32>
    %cst_13 = arith.constant dense<0.000000e+00> : vector<8x256xf32>
    %30 = tpu.matmul %29, %4, %cst_13 {dimension_numbers = #tpu.dot_dimension_numbers<[1], [0], [0], [1], [0, 0, 1, 1], [], []>} : vector<8x96xf32>, vector<96x256xf32>, vector<8x256xf32> -> vector<8x256xf32>
    %31 = vector.extract_strided_slice %30 {offsets = [0, 128], sizes = [8, 128], strides = [1, 1]} : vector<8x256xf32> to vector<8x128xf32>
    %c0_14 = arith.constant 0 : index
    %c0_15 = arith.constant 0 : index
    %32 = vector.load %arg3[%c0_14, %c0_15] : memref<64x128xf32, #tpu.memory_space<vmem>>, vector<8x128xf32>
    %33 = arith.addf %31, %32 : vector<8x128xf32>
    %34 = arith.negf %33 : vector<8x128xf32>
    %35 = math.exp %34 : vector<8x128xf32>
    %cst_16 = arith.constant 1.000000e+00 : f32
    %36 = vector.broadcast %cst_16 : f32 to vector<8x128xf32>
    %37 = arith.addf %36, %35 : vector<8x128xf32>
    %38 = arith.divf %36, %37 : vector<8x128xf32>
    %39 = math.tanh %33 : vector<8x128xf32>
    %40 = vector.extract_strided_slice %38 {offsets = [0, 0], sizes = [8, 32], strides = [1, 1]} : vector<8x128xf32> to vector<8x32xf32>
    %41 = vector.extract_strided_slice %38 {offsets = [0, 32], sizes = [8, 32], strides = [1, 1]} : vector<8x128xf32> to vector<8x32xf32>
    %42 = vector.extract_strided_slice %39 {offsets = [0, 64], sizes = [8, 32], strides = [1, 1]} : vector<8x128xf32> to vector<8x32xf32>
    %43 = vector.extract_strided_slice %38 {offsets = [0, 96], sizes = [8, 32], strides = [1, 1]} : vector<8x128xf32> to vector<8x32xf32>
    %44 = arith.mulf %41, %5 : vector<8x32xf32>
    %45 = arith.mulf %40, %42 : vector<8x32xf32>
    %46 = arith.addf %44, %45 : vector<8x32xf32>
    %47 = math.tanh %46 : vector<8x32xf32>
    %48 = arith.mulf %43, %47 : vector<8x32xf32>
    %49 = vector.extract_strided_slice %30 {offsets = [0, 0], sizes = [8, 128], strides = [1, 1]} : vector<8x256xf32> to vector<8x128xf32>
    %c8 = arith.constant 8 : index
    %c0_17 = arith.constant 0 : index
    %50 = vector.load %arg8[%c8, %c0_17] : memref<64x128xf32, #tpu.memory_space<vmem>>, vector<8x128xf32>
    %51 = arith.addf %49, %50 : vector<8x128xf32>
    %52 = arith.negf %51 : vector<8x128xf32>
    %53 = math.exp %52 : vector<8x128xf32>
    %cst_18 = arith.constant 1.000000e+00 : f32
    %54 = vector.broadcast %cst_18 : f32 to vector<8x128xf32>
    %55 = arith.addf %54, %53 : vector<8x128xf32>
    %56 = arith.divf %54, %55 : vector<8x128xf32>
    %57 = math.tanh %51 : vector<8x128xf32>
    %58 = vector.extract_strided_slice %56 {offsets = [0, 0], sizes = [8, 32], strides = [1, 1]} : vector<8x128xf32> to vector<8x32xf32>
    %59 = vector.extract_strided_slice %56 {offsets = [0, 32], sizes = [8, 32], strides = [1, 1]} : vector<8x128xf32> to vector<8x32xf32>
    %60 = vector.extract_strided_slice %57 {offsets = [0, 64], sizes = [8, 32], strides = [1, 1]} : vector<8x128xf32> to vector<8x32xf32>
    %61 = vector.extract_strided_slice %56 {offsets = [0, 96], sizes = [8, 32], strides = [1, 1]} : vector<8x128xf32> to vector<8x32xf32>
    %62 = arith.mulf %59, %23 : vector<8x32xf32>
    %63 = arith.mulf %58, %60 : vector<8x32xf32>
    %64 = arith.addf %62, %63 : vector<8x32xf32>
    %65 = math.tanh %64 : vector<8x32xf32>
    %66 = arith.mulf %61, %65 : vector<8x32xf32>
    %c1 = arith.constant 1 : index
    %67 = memref.load %arg4[%c1] : memref<8xf32, #tpu.memory_space<smem>>
    %68 = vector.broadcast %67 : f32 to vector<8x32xf32>
    %69 = arith.mulf %66, %68 : vector<8x32xf32>
    %70 = tpu.concatenate %66, %69, %48 in 1 : vector<8x32xf32>, vector<8x32xf32>, vector<8x32xf32> -> vector<8x96xf32>
    %cst_19 = arith.constant dense<0.000000e+00> : vector<8x256xf32>
    %71 = tpu.matmul %70, %4, %cst_19 {dimension_numbers = #tpu.dot_dimension_numbers<[1], [0], [0], [1], [0, 0, 1, 1], [], []>} : vector<8x96xf32>, vector<96x256xf32>, vector<8x256xf32> -> vector<8x256xf32>
    %72 = vector.extract_strided_slice %71 {offsets = [0, 128], sizes = [8, 128], strides = [1, 1]} : vector<8x256xf32> to vector<8x128xf32>
    %c8_20 = arith.constant 8 : index
    %c0_21 = arith.constant 0 : index
    %73 = vector.load %arg3[%c8_20, %c0_21] : memref<64x128xf32, #tpu.memory_space<vmem>>, vector<8x128xf32>
    %74 = arith.addf %72, %73 : vector<8x128xf32>
    %75 = arith.negf %74 : vector<8x128xf32>
    %76 = math.exp %75 : vector<8x128xf32>
    %cst_22 = arith.constant 1.000000e+00 : f32
    %77 = vector.broadcast %cst_22 : f32 to vector<8x128xf32>
    %78 = arith.addf %77, %76 : vector<8x128xf32>
    %79 = arith.divf %77, %78 : vector<8x128xf32>
    %80 = math.tanh %74 : vector<8x128xf32>
    %81 = vector.extract_strided_slice %79 {offsets = [0, 0], sizes = [8, 32], strides = [1, 1]} : vector<8x128xf32> to vector<8x32xf32>
    %82 = vector.extract_strided_slice %79 {offsets = [0, 32], sizes = [8, 32], strides = [1, 1]} : vector<8x128xf32> to vector<8x32xf32>
    %83 = vector.extract_strided_slice %80 {offsets = [0, 64], sizes = [8, 32], strides = [1, 1]} : vector<8x128xf32> to vector<8x32xf32>
    %84 = vector.extract_strided_slice %79 {offsets = [0, 96], sizes = [8, 32], strides = [1, 1]} : vector<8x128xf32> to vector<8x32xf32>
    %85 = arith.mulf %82, %46 : vector<8x32xf32>
    %86 = arith.mulf %81, %83 : vector<8x32xf32>
    %87 = arith.addf %85, %86 : vector<8x32xf32>
    %88 = math.tanh %87 : vector<8x32xf32>
    %89 = arith.mulf %84, %88 : vector<8x32xf32>
    %90 = vector.extract_strided_slice %71 {offsets = [0, 0], sizes = [8, 128], strides = [1, 1]} : vector<8x256xf32> to vector<8x128xf32>
    %c16 = arith.constant 16 : index
    %c0_23 = arith.constant 0 : index
    %91 = vector.load %arg8[%c16, %c0_23] : memref<64x128xf32, #tpu.memory_space<vmem>>, vector<8x128xf32>
    %92 = arith.addf %90, %91 : vector<8x128xf32>
    %93 = arith.negf %92 : vector<8x128xf32>
    %94 = math.exp %93 : vector<8x128xf32>
    %cst_24 = arith.constant 1.000000e+00 : f32
    %95 = vector.broadcast %cst_24 : f32 to vector<8x128xf32>
    %96 = arith.addf %95, %94 : vector<8x128xf32>
    %97 = arith.divf %95, %96 : vector<8x128xf32>
    %98 = math.tanh %92 : vector<8x128xf32>
    %99 = vector.extract_strided_slice %97 {offsets = [0, 0], sizes = [8, 32], strides = [1, 1]} : vector<8x128xf32> to vector<8x32xf32>
    %100 = vector.extract_strided_slice %97 {offsets = [0, 32], sizes = [8, 32], strides = [1, 1]} : vector<8x128xf32> to vector<8x32xf32>
    %101 = vector.extract_strided_slice %98 {offsets = [0, 64], sizes = [8, 32], strides = [1, 1]} : vector<8x128xf32> to vector<8x32xf32>
    %102 = vector.extract_strided_slice %97 {offsets = [0, 96], sizes = [8, 32], strides = [1, 1]} : vector<8x128xf32> to vector<8x32xf32>
    %103 = arith.mulf %100, %64 : vector<8x32xf32>
    %104 = arith.mulf %99, %101 : vector<8x32xf32>
    %105 = arith.addf %103, %104 : vector<8x32xf32>
    %106 = math.tanh %105 : vector<8x32xf32>
    %107 = arith.mulf %102, %106 : vector<8x32xf32>
    %c2 = arith.constant 2 : index
    %108 = memref.load %arg4[%c2] : memref<8xf32, #tpu.memory_space<smem>>
    %109 = vector.broadcast %108 : f32 to vector<8x32xf32>
    %110 = arith.mulf %107, %109 : vector<8x32xf32>
    %111 = tpu.concatenate %107, %110, %89 in 1 : vector<8x32xf32>, vector<8x32xf32>, vector<8x32xf32> -> vector<8x96xf32>
    %cst_25 = arith.constant dense<0.000000e+00> : vector<8x256xf32>
    %112 = tpu.matmul %111, %4, %cst_25 {dimension_numbers = #tpu.dot_dimension_numbers<[1], [0], [0], [1], [0, 0, 1, 1], [], []>} : vector<8x96xf32>, vector<96x256xf32>, vector<8x256xf32> -> vector<8x256xf32>
    %113 = vector.extract_strided_slice %112 {offsets = [0, 128], sizes = [8, 128], strides = [1, 1]} : vector<8x256xf32> to vector<8x128xf32>
    %c16_26 = arith.constant 16 : index
    %c0_27 = arith.constant 0 : index
    %114 = vector.load %arg3[%c16_26, %c0_27] : memref<64x128xf32, #tpu.memory_space<vmem>>, vector<8x128xf32>
    %115 = arith.addf %113, %114 : vector<8x128xf32>
    %116 = arith.negf %115 : vector<8x128xf32>
    %117 = math.exp %116 : vector<8x128xf32>
    %cst_28 = arith.constant 1.000000e+00 : f32
    %118 = vector.broadcast %cst_28 : f32 to vector<8x128xf32>
    %119 = arith.addf %118, %117 : vector<8x128xf32>
    %120 = arith.divf %118, %119 : vector<8x128xf32>
    %121 = math.tanh %115 : vector<8x128xf32>
    %122 = vector.extract_strided_slice %120 {offsets = [0, 0], sizes = [8, 32], strides = [1, 1]} : vector<8x128xf32> to vector<8x32xf32>
    %123 = vector.extract_strided_slice %120 {offsets = [0, 32], sizes = [8, 32], strides = [1, 1]} : vector<8x128xf32> to vector<8x32xf32>
    %124 = vector.extract_strided_slice %121 {offsets = [0, 64], sizes = [8, 32], strides = [1, 1]} : vector<8x128xf32> to vector<8x32xf32>
    %125 = vector.extract_strided_slice %120 {offsets = [0, 96], sizes = [8, 32], strides = [1, 1]} : vector<8x128xf32> to vector<8x32xf32>
    %126 = arith.mulf %123, %87 : vector<8x32xf32>
    %127 = arith.mulf %122, %124 : vector<8x32xf32>
    %128 = arith.addf %126, %127 : vector<8x32xf32>
    %129 = math.tanh %128 : vector<8x32xf32>
    %130 = arith.mulf %125, %129 : vector<8x32xf32>
    %131 = vector.extract_strided_slice %112 {offsets = [0, 0], sizes = [8, 128], strides = [1, 1]} : vector<8x256xf32> to vector<8x128xf32>
    %c24 = arith.constant 24 : index
    %c0_29 = arith.constant 0 : index
    %132 = vector.load %arg8[%c24, %c0_29] : memref<64x128xf32, #tpu.memory_space<vmem>>, vector<8x128xf32>
    %133 = arith.addf %131, %132 : vector<8x128xf32>
    %134 = arith.negf %133 : vector<8x128xf32>
    %135 = math.exp %134 : vector<8x128xf32>
    %cst_30 = arith.constant 1.000000e+00 : f32
    %136 = vector.broadcast %cst_30 : f32 to vector<8x128xf32>
    %137 = arith.addf %136, %135 : vector<8x128xf32>
    %138 = arith.divf %136, %137 : vector<8x128xf32>
    %139 = math.tanh %133 : vector<8x128xf32>
    %140 = vector.extract_strided_slice %138 {offsets = [0, 0], sizes = [8, 32], strides = [1, 1]} : vector<8x128xf32> to vector<8x32xf32>
    %141 = vector.extract_strided_slice %138 {offsets = [0, 32], sizes = [8, 32], strides = [1, 1]} : vector<8x128xf32> to vector<8x32xf32>
    %142 = vector.extract_strided_slice %139 {offsets = [0, 64], sizes = [8, 32], strides = [1, 1]} : vector<8x128xf32> to vector<8x32xf32>
    %143 = vector.extract_strided_slice %138 {offsets = [0, 96], sizes = [8, 32], strides = [1, 1]} : vector<8x128xf32> to vector<8x32xf32>
    %144 = arith.mulf %141, %105 : vector<8x32xf32>
    %145 = arith.mulf %140, %142 : vector<8x32xf32>
    %146 = arith.addf %144, %145 : vector<8x32xf32>
    %147 = math.tanh %146 : vector<8x32xf32>
    %148 = arith.mulf %143, %147 : vector<8x32xf32>
    %c3 = arith.constant 3 : index
    %149 = memref.load %arg4[%c3] : memref<8xf32, #tpu.memory_space<smem>>
    %150 = vector.broadcast %149 : f32 to vector<8x32xf32>
    %151 = arith.mulf %148, %150 : vector<8x32xf32>
    %152 = tpu.concatenate %148, %151, %130 in 1 : vector<8x32xf32>, vector<8x32xf32>, vector<8x32xf32> -> vector<8x96xf32>
    %cst_31 = arith.constant dense<0.000000e+00> : vector<8x256xf32>
    %153 = tpu.matmul %152, %4, %cst_31 {dimension_numbers = #tpu.dot_dimension_numbers<[1], [0], [0], [1], [0, 0, 1, 1], [], []>} : vector<8x96xf32>, vector<96x256xf32>, vector<8x256xf32> -> vector<8x256xf32>
    %154 = vector.extract_strided_slice %153 {offsets = [0, 128], sizes = [8, 128], strides = [1, 1]} : vector<8x256xf32> to vector<8x128xf32>
    %c24_32 = arith.constant 24 : index
    %c0_33 = arith.constant 0 : index
    %155 = vector.load %arg3[%c24_32, %c0_33] : memref<64x128xf32, #tpu.memory_space<vmem>>, vector<8x128xf32>
    %156 = arith.addf %154, %155 : vector<8x128xf32>
    %157 = arith.negf %156 : vector<8x128xf32>
    %158 = math.exp %157 : vector<8x128xf32>
    %cst_34 = arith.constant 1.000000e+00 : f32
    %159 = vector.broadcast %cst_34 : f32 to vector<8x128xf32>
    %160 = arith.addf %159, %158 : vector<8x128xf32>
    %161 = arith.divf %159, %160 : vector<8x128xf32>
    %162 = math.tanh %156 : vector<8x128xf32>
    %163 = vector.extract_strided_slice %161 {offsets = [0, 0], sizes = [8, 32], strides = [1, 1]} : vector<8x128xf32> to vector<8x32xf32>
    %164 = vector.extract_strided_slice %161 {offsets = [0, 32], sizes = [8, 32], strides = [1, 1]} : vector<8x128xf32> to vector<8x32xf32>
    %165 = vector.extract_strided_slice %162 {offsets = [0, 64], sizes = [8, 32], strides = [1, 1]} : vector<8x128xf32> to vector<8x32xf32>
    %166 = vector.extract_strided_slice %161 {offsets = [0, 96], sizes = [8, 32], strides = [1, 1]} : vector<8x128xf32> to vector<8x32xf32>
    %167 = arith.mulf %164, %128 : vector<8x32xf32>
    %168 = arith.mulf %163, %165 : vector<8x32xf32>
    %169 = arith.addf %167, %168 : vector<8x32xf32>
    %170 = math.tanh %169 : vector<8x32xf32>
    %171 = arith.mulf %166, %170 : vector<8x32xf32>
    %172 = vector.extract_strided_slice %153 {offsets = [0, 0], sizes = [8, 128], strides = [1, 1]} : vector<8x256xf32> to vector<8x128xf32>
    %c32 = arith.constant 32 : index
    %c0_35 = arith.constant 0 : index
    %173 = vector.load %arg8[%c32, %c0_35] : memref<64x128xf32, #tpu.memory_space<vmem>>, vector<8x128xf32>
    %174 = arith.addf %172, %173 : vector<8x128xf32>
    %175 = arith.negf %174 : vector<8x128xf32>
    %176 = math.exp %175 : vector<8x128xf32>
    %cst_36 = arith.constant 1.000000e+00 : f32
    %177 = vector.broadcast %cst_36 : f32 to vector<8x128xf32>
    %178 = arith.addf %177, %176 : vector<8x128xf32>
    %179 = arith.divf %177, %178 : vector<8x128xf32>
    %180 = math.tanh %174 : vector<8x128xf32>
    %181 = vector.extract_strided_slice %179 {offsets = [0, 0], sizes = [8, 32], strides = [1, 1]} : vector<8x128xf32> to vector<8x32xf32>
    %182 = vector.extract_strided_slice %179 {offsets = [0, 32], sizes = [8, 32], strides = [1, 1]} : vector<8x128xf32> to vector<8x32xf32>
    %183 = vector.extract_strided_slice %180 {offsets = [0, 64], sizes = [8, 32], strides = [1, 1]} : vector<8x128xf32> to vector<8x32xf32>
    %184 = vector.extract_strided_slice %179 {offsets = [0, 96], sizes = [8, 32], strides = [1, 1]} : vector<8x128xf32> to vector<8x32xf32>
    %185 = arith.mulf %182, %146 : vector<8x32xf32>
    %186 = arith.mulf %181, %183 : vector<8x32xf32>
    %187 = arith.addf %185, %186 : vector<8x32xf32>
    %188 = math.tanh %187 : vector<8x32xf32>
    %189 = arith.mulf %184, %188 : vector<8x32xf32>
    %c4 = arith.constant 4 : index
    %190 = memref.load %arg4[%c4] : memref<8xf32, #tpu.memory_space<smem>>
    %191 = vector.broadcast %190 : f32 to vector<8x32xf32>
    %192 = arith.mulf %189, %191 : vector<8x32xf32>
    %193 = tpu.concatenate %189, %192, %171 in 1 : vector<8x32xf32>, vector<8x32xf32>, vector<8x32xf32> -> vector<8x96xf32>
    %cst_37 = arith.constant dense<0.000000e+00> : vector<8x256xf32>
    %194 = tpu.matmul %193, %4, %cst_37 {dimension_numbers = #tpu.dot_dimension_numbers<[1], [0], [0], [1], [0, 0, 1, 1], [], []>} : vector<8x96xf32>, vector<96x256xf32>, vector<8x256xf32> -> vector<8x256xf32>
    %195 = vector.extract_strided_slice %194 {offsets = [0, 128], sizes = [8, 128], strides = [1, 1]} : vector<8x256xf32> to vector<8x128xf32>
    %c32_38 = arith.constant 32 : index
    %c0_39 = arith.constant 0 : index
    %196 = vector.load %arg3[%c32_38, %c0_39] : memref<64x128xf32, #tpu.memory_space<vmem>>, vector<8x128xf32>
    %197 = arith.addf %195, %196 : vector<8x128xf32>
    %198 = arith.negf %197 : vector<8x128xf32>
    %199 = math.exp %198 : vector<8x128xf32>
    %cst_40 = arith.constant 1.000000e+00 : f32
    %200 = vector.broadcast %cst_40 : f32 to vector<8x128xf32>
    %201 = arith.addf %200, %199 : vector<8x128xf32>
    %202 = arith.divf %200, %201 : vector<8x128xf32>
    %203 = math.tanh %197 : vector<8x128xf32>
    %204 = vector.extract_strided_slice %202 {offsets = [0, 0], sizes = [8, 32], strides = [1, 1]} : vector<8x128xf32> to vector<8x32xf32>
    %205 = vector.extract_strided_slice %202 {offsets = [0, 32], sizes = [8, 32], strides = [1, 1]} : vector<8x128xf32> to vector<8x32xf32>
    %206 = vector.extract_strided_slice %203 {offsets = [0, 64], sizes = [8, 32], strides = [1, 1]} : vector<8x128xf32> to vector<8x32xf32>
    %207 = vector.extract_strided_slice %202 {offsets = [0, 96], sizes = [8, 32], strides = [1, 1]} : vector<8x128xf32> to vector<8x32xf32>
    %208 = arith.mulf %205, %169 : vector<8x32xf32>
    %209 = arith.mulf %204, %206 : vector<8x32xf32>
    %210 = arith.addf %208, %209 : vector<8x32xf32>
    %211 = math.tanh %210 : vector<8x32xf32>
    %212 = arith.mulf %207, %211 : vector<8x32xf32>
    %213 = vector.extract_strided_slice %194 {offsets = [0, 0], sizes = [8, 128], strides = [1, 1]} : vector<8x256xf32> to vector<8x128xf32>
    %c40 = arith.constant 40 : index
    %c0_41 = arith.constant 0 : index
    %214 = vector.load %arg8[%c40, %c0_41] : memref<64x128xf32, #tpu.memory_space<vmem>>, vector<8x128xf32>
    %215 = arith.addf %213, %214 : vector<8x128xf32>
    %216 = arith.negf %215 : vector<8x128xf32>
    %217 = math.exp %216 : vector<8x128xf32>
    %cst_42 = arith.constant 1.000000e+00 : f32
    %218 = vector.broadcast %cst_42 : f32 to vector<8x128xf32>
    %219 = arith.addf %218, %217 : vector<8x128xf32>
    %220 = arith.divf %218, %219 : vector<8x128xf32>
    %221 = math.tanh %215 : vector<8x128xf32>
    %222 = vector.extract_strided_slice %220 {offsets = [0, 0], sizes = [8, 32], strides = [1, 1]} : vector<8x128xf32> to vector<8x32xf32>
    %223 = vector.extract_strided_slice %220 {offsets = [0, 32], sizes = [8, 32], strides = [1, 1]} : vector<8x128xf32> to vector<8x32xf32>
    %224 = vector.extract_strided_slice %221 {offsets = [0, 64], sizes = [8, 32], strides = [1, 1]} : vector<8x128xf32> to vector<8x32xf32>
    %225 = vector.extract_strided_slice %220 {offsets = [0, 96], sizes = [8, 32], strides = [1, 1]} : vector<8x128xf32> to vector<8x32xf32>
    %226 = arith.mulf %223, %187 : vector<8x32xf32>
    %227 = arith.mulf %222, %224 : vector<8x32xf32>
    %228 = arith.addf %226, %227 : vector<8x32xf32>
    %229 = math.tanh %228 : vector<8x32xf32>
    %230 = arith.mulf %225, %229 : vector<8x32xf32>
    %c5 = arith.constant 5 : index
    %231 = memref.load %arg4[%c5] : memref<8xf32, #tpu.memory_space<smem>>
    %232 = vector.broadcast %231 : f32 to vector<8x32xf32>
    %233 = arith.mulf %230, %232 : vector<8x32xf32>
    %234 = tpu.concatenate %230, %233, %212 in 1 : vector<8x32xf32>, vector<8x32xf32>, vector<8x32xf32> -> vector<8x96xf32>
    %cst_43 = arith.constant dense<0.000000e+00> : vector<8x256xf32>
    %235 = tpu.matmul %234, %4, %cst_43 {dimension_numbers = #tpu.dot_dimension_numbers<[1], [0], [0], [1], [0, 0, 1, 1], [], []>} : vector<8x96xf32>, vector<96x256xf32>, vector<8x256xf32> -> vector<8x256xf32>
    %236 = vector.extract_strided_slice %235 {offsets = [0, 128], sizes = [8, 128], strides = [1, 1]} : vector<8x256xf32> to vector<8x128xf32>
    %c40_44 = arith.constant 40 : index
    %c0_45 = arith.constant 0 : index
    %237 = vector.load %arg3[%c40_44, %c0_45] : memref<64x128xf32, #tpu.memory_space<vmem>>, vector<8x128xf32>
    %238 = arith.addf %236, %237 : vector<8x128xf32>
    %239 = arith.negf %238 : vector<8x128xf32>
    %240 = math.exp %239 : vector<8x128xf32>
    %cst_46 = arith.constant 1.000000e+00 : f32
    %241 = vector.broadcast %cst_46 : f32 to vector<8x128xf32>
    %242 = arith.addf %241, %240 : vector<8x128xf32>
    %243 = arith.divf %241, %242 : vector<8x128xf32>
    %244 = math.tanh %238 : vector<8x128xf32>
    %245 = vector.extract_strided_slice %243 {offsets = [0, 0], sizes = [8, 32], strides = [1, 1]} : vector<8x128xf32> to vector<8x32xf32>
    %246 = vector.extract_strided_slice %243 {offsets = [0, 32], sizes = [8, 32], strides = [1, 1]} : vector<8x128xf32> to vector<8x32xf32>
    %247 = vector.extract_strided_slice %244 {offsets = [0, 64], sizes = [8, 32], strides = [1, 1]} : vector<8x128xf32> to vector<8x32xf32>
    %248 = vector.extract_strided_slice %243 {offsets = [0, 96], sizes = [8, 32], strides = [1, 1]} : vector<8x128xf32> to vector<8x32xf32>
    %249 = arith.mulf %246, %210 : vector<8x32xf32>
    %250 = arith.mulf %245, %247 : vector<8x32xf32>
    %251 = arith.addf %249, %250 : vector<8x32xf32>
    %252 = math.tanh %251 : vector<8x32xf32>
    %253 = arith.mulf %248, %252 : vector<8x32xf32>
    %254 = vector.extract_strided_slice %235 {offsets = [0, 0], sizes = [8, 128], strides = [1, 1]} : vector<8x256xf32> to vector<8x128xf32>
    %c48 = arith.constant 48 : index
    %c0_47 = arith.constant 0 : index
    %255 = vector.load %arg8[%c48, %c0_47] : memref<64x128xf32, #tpu.memory_space<vmem>>, vector<8x128xf32>
    %256 = arith.addf %254, %255 : vector<8x128xf32>
    %257 = arith.negf %256 : vector<8x128xf32>
    %258 = math.exp %257 : vector<8x128xf32>
    %cst_48 = arith.constant 1.000000e+00 : f32
    %259 = vector.broadcast %cst_48 : f32 to vector<8x128xf32>
    %260 = arith.addf %259, %258 : vector<8x128xf32>
    %261 = arith.divf %259, %260 : vector<8x128xf32>
    %262 = math.tanh %256 : vector<8x128xf32>
    %263 = vector.extract_strided_slice %261 {offsets = [0, 0], sizes = [8, 32], strides = [1, 1]} : vector<8x128xf32> to vector<8x32xf32>
    %264 = vector.extract_strided_slice %261 {offsets = [0, 32], sizes = [8, 32], strides = [1, 1]} : vector<8x128xf32> to vector<8x32xf32>
    %265 = vector.extract_strided_slice %262 {offsets = [0, 64], sizes = [8, 32], strides = [1, 1]} : vector<8x128xf32> to vector<8x32xf32>
    %266 = vector.extract_strided_slice %261 {offsets = [0, 96], sizes = [8, 32], strides = [1, 1]} : vector<8x128xf32> to vector<8x32xf32>
    %267 = arith.mulf %264, %228 : vector<8x32xf32>
    %268 = arith.mulf %263, %265 : vector<8x32xf32>
    %269 = arith.addf %267, %268 : vector<8x32xf32>
    %270 = math.tanh %269 : vector<8x32xf32>
    %271 = arith.mulf %266, %270 : vector<8x32xf32>
    %c6 = arith.constant 6 : index
    %272 = memref.load %arg4[%c6] : memref<8xf32, #tpu.memory_space<smem>>
    %273 = vector.broadcast %272 : f32 to vector<8x32xf32>
    %274 = arith.mulf %271, %273 : vector<8x32xf32>
    %275 = tpu.concatenate %271, %274, %253 in 1 : vector<8x32xf32>, vector<8x32xf32>, vector<8x32xf32> -> vector<8x96xf32>
    %cst_49 = arith.constant dense<0.000000e+00> : vector<8x256xf32>
    %276 = tpu.matmul %275, %4, %cst_49 {dimension_numbers = #tpu.dot_dimension_numbers<[1], [0], [0], [1], [0, 0, 1, 1], [], []>} : vector<8x96xf32>, vector<96x256xf32>, vector<8x256xf32> -> vector<8x256xf32>
    %277 = vector.extract_strided_slice %276 {offsets = [0, 128], sizes = [8, 128], strides = [1, 1]} : vector<8x256xf32> to vector<8x128xf32>
    %c48_50 = arith.constant 48 : index
    %c0_51 = arith.constant 0 : index
    %278 = vector.load %arg3[%c48_50, %c0_51] : memref<64x128xf32, #tpu.memory_space<vmem>>, vector<8x128xf32>
    %279 = arith.addf %277, %278 : vector<8x128xf32>
    %280 = arith.negf %279 : vector<8x128xf32>
    %281 = math.exp %280 : vector<8x128xf32>
    %cst_52 = arith.constant 1.000000e+00 : f32
    %282 = vector.broadcast %cst_52 : f32 to vector<8x128xf32>
    %283 = arith.addf %282, %281 : vector<8x128xf32>
    %284 = arith.divf %282, %283 : vector<8x128xf32>
    %285 = math.tanh %279 : vector<8x128xf32>
    %286 = vector.extract_strided_slice %284 {offsets = [0, 0], sizes = [8, 32], strides = [1, 1]} : vector<8x128xf32> to vector<8x32xf32>
    %287 = vector.extract_strided_slice %284 {offsets = [0, 32], sizes = [8, 32], strides = [1, 1]} : vector<8x128xf32> to vector<8x32xf32>
    %288 = vector.extract_strided_slice %285 {offsets = [0, 64], sizes = [8, 32], strides = [1, 1]} : vector<8x128xf32> to vector<8x32xf32>
    %289 = vector.extract_strided_slice %284 {offsets = [0, 96], sizes = [8, 32], strides = [1, 1]} : vector<8x128xf32> to vector<8x32xf32>
    %290 = arith.mulf %287, %251 : vector<8x32xf32>
    %291 = arith.mulf %286, %288 : vector<8x32xf32>
    %292 = arith.addf %290, %291 : vector<8x32xf32>
    %293 = math.tanh %292 : vector<8x32xf32>
    %294 = arith.mulf %289, %293 : vector<8x32xf32>
    %295 = vector.extract_strided_slice %276 {offsets = [0, 0], sizes = [8, 128], strides = [1, 1]} : vector<8x256xf32> to vector<8x128xf32>
    %c56 = arith.constant 56 : index
    %c0_53 = arith.constant 0 : index
    %296 = vector.load %arg8[%c56, %c0_53] : memref<64x128xf32, #tpu.memory_space<vmem>>, vector<8x128xf32>
    %297 = arith.addf %295, %296 : vector<8x128xf32>
    %298 = arith.negf %297 : vector<8x128xf32>
    %299 = math.exp %298 : vector<8x128xf32>
    %cst_54 = arith.constant 1.000000e+00 : f32
    %300 = vector.broadcast %cst_54 : f32 to vector<8x128xf32>
    %301 = arith.addf %300, %299 : vector<8x128xf32>
    %302 = arith.divf %300, %301 : vector<8x128xf32>
    %303 = math.tanh %297 : vector<8x128xf32>
    %304 = vector.extract_strided_slice %302 {offsets = [0, 0], sizes = [8, 32], strides = [1, 1]} : vector<8x128xf32> to vector<8x32xf32>
    %305 = vector.extract_strided_slice %302 {offsets = [0, 32], sizes = [8, 32], strides = [1, 1]} : vector<8x128xf32> to vector<8x32xf32>
    %306 = vector.extract_strided_slice %303 {offsets = [0, 64], sizes = [8, 32], strides = [1, 1]} : vector<8x128xf32> to vector<8x32xf32>
    %307 = vector.extract_strided_slice %302 {offsets = [0, 96], sizes = [8, 32], strides = [1, 1]} : vector<8x128xf32> to vector<8x32xf32>
    %308 = arith.mulf %305, %269 : vector<8x32xf32>
    %309 = arith.mulf %304, %306 : vector<8x32xf32>
    %310 = arith.addf %308, %309 : vector<8x32xf32>
    %311 = math.tanh %310 : vector<8x32xf32>
    %312 = arith.mulf %307, %311 : vector<8x32xf32>
    %c7 = arith.constant 7 : index
    %313 = memref.load %arg4[%c7] : memref<8xf32, #tpu.memory_space<smem>>
    %314 = vector.broadcast %313 : f32 to vector<8x32xf32>
    %315 = arith.mulf %312, %314 : vector<8x32xf32>
    %316 = tpu.concatenate %312, %315, %294 in 1 : vector<8x32xf32>, vector<8x32xf32>, vector<8x32xf32> -> vector<8x96xf32>
    %cst_55 = arith.constant dense<0.000000e+00> : vector<8x256xf32>
    %317 = tpu.matmul %316, %4, %cst_55 {dimension_numbers = #tpu.dot_dimension_numbers<[1], [0], [0], [1], [0, 0, 1, 1], [], []>} : vector<8x96xf32>, vector<96x256xf32>, vector<8x256xf32> -> vector<8x256xf32>
    %318 = vector.extract_strided_slice %317 {offsets = [0, 128], sizes = [8, 128], strides = [1, 1]} : vector<8x256xf32> to vector<8x128xf32>
    %c56_56 = arith.constant 56 : index
    %c0_57 = arith.constant 0 : index
    %319 = vector.load %arg3[%c56_56, %c0_57] : memref<64x128xf32, #tpu.memory_space<vmem>>, vector<8x128xf32>
    %320 = arith.addf %318, %319 : vector<8x128xf32>
    %321 = arith.negf %320 : vector<8x128xf32>
    %322 = math.exp %321 : vector<8x128xf32>
    %cst_58 = arith.constant 1.000000e+00 : f32
    %323 = vector.broadcast %cst_58 : f32 to vector<8x128xf32>
    %324 = arith.addf %323, %322 : vector<8x128xf32>
    %325 = arith.divf %323, %324 : vector<8x128xf32>
    %326 = math.tanh %320 : vector<8x128xf32>
    %327 = vector.extract_strided_slice %325 {offsets = [0, 0], sizes = [8, 32], strides = [1, 1]} : vector<8x128xf32> to vector<8x32xf32>
    %328 = vector.extract_strided_slice %325 {offsets = [0, 32], sizes = [8, 32], strides = [1, 1]} : vector<8x128xf32> to vector<8x32xf32>
    %329 = vector.extract_strided_slice %326 {offsets = [0, 64], sizes = [8, 32], strides = [1, 1]} : vector<8x128xf32> to vector<8x32xf32>
    %330 = vector.extract_strided_slice %325 {offsets = [0, 96], sizes = [8, 32], strides = [1, 1]} : vector<8x128xf32> to vector<8x32xf32>
    %331 = arith.mulf %328, %292 : vector<8x32xf32>
    %332 = arith.mulf %327, %329 : vector<8x32xf32>
    %333 = arith.addf %331, %332 : vector<8x32xf32>
    %334 = math.tanh %333 : vector<8x32xf32>
    %335 = arith.mulf %330, %334 : vector<8x32xf32>
    %c0_59 = arith.constant 0 : index
    %c0_60 = arith.constant 0 : index
    %336 = vector.load %arg5[%c0_59, %c0_60] : memref<32x1xf32, #tpu.memory_space<vmem>>, vector<32x1xf32>
    %cst_61 = arith.constant dense<0.000000e+00> : vector<8x1xf32>
    %337 = tpu.matmul %335, %336, %cst_61 {dimension_numbers = #tpu.dot_dimension_numbers<[1], [0], [0], [1], [0, 0, 1, 1], [], []>} : vector<8x32xf32>, vector<32x1xf32>, vector<8x1xf32> -> vector<8x1xf32>
    %c0_62 = arith.constant 0 : index
    %338 = memref.load %arg6[%c0_62] : memref<1xf32, #tpu.memory_space<smem>>
    %339 = vector.broadcast %338 : f32 to vector<8x1xf32>
    %340 = arith.addf %337, %339 : vector<8x1xf32>
    %c0_63 = arith.constant 0 : index
    %c0_64 = arith.constant 0 : index
    %341 = vector.load %arg7[%c0_63, %c0_64] : memref<8x1xf32, #tpu.memory_space<vmem>>, vector<8x1xf32>
    tpu.vector_store %arg7[%c0_63, %c0_64], %340 {strides = array<i32>} : memref<8x1xf32, #tpu.memory_space<vmem>>, vector<8x1xf32>,
    return
  }
}

</mosaic_0001>

<llo_original>
// kernel: lstm_simple_forward.1
$region0: #{lstm_simple_forward.1}
  #allocation0 [shape = 'u32[]', space=smem, size = 0x4, offset = 0x4, fixed_abs, tag = 'smem constant byte address 0x4 - core index']
  #allocation1 [shape = 'u32[144,128]{1,0:T(1,128)}', space=vmem, size = 0x12000, scoped, tag = 'internal scratch']
  #allocation2 [shape = 'f32[64,128]{1,0:T(8,128)}', space=vmem, size = 0x8000, scoped, tag = 'scratch operand']
  #allocation3 [shape = 'f32[1]{0:T(128)S(6)}', space=smem, size = 0x200, scoped, tag = 'scoped memory for lstm_simple_forward.1']
  %s0 = inlined_call_operand.vmem [shape: f32[64,12], index: 0, kind: input, shape index: {}]
  %s1 = inlined_call_operand.vmem [shape: f32[12,128], index: 1, kind: input, shape index: {}]
  %s2 = inlined_call_operand.vmem [shape: f32[96,256], index: 2, kind: input, shape index: {}]
  %s3 = inlined_call_operand.vmem [shape: f32[64,128], index: 3, kind: input, shape index: {}]
  %s4 = inlined_call_operand.vmem [shape: f32[8], index: 4, kind: input, shape index: {}]
  %s5 = inlined_call_operand.vmem [shape: f32[32,1], index: 5, kind: input, shape index: {}]
  %s6 = inlined_call_operand.<no memory space> [shape: f32[1], index: 6, kind: input, shape index: {}]
  %s7 = inlined_call_operand.vmem [shape: f32[8,1], index: 7, kind: output, shape index: {}]
  %s8 = sld [smem:[#allocation0]]
  $region42: #{lstm_simple_forward.1} parent=0
    _
  %s10 = ssub.s32 1, %s8
  %s11 = scalar_select 0, %s10, %s8
  %12 = sst [smem:[#allocation3]] %s6
  $region1: #{lstm_simple_forward.1} parent=0
    #allocation4 [shape = 'u8[512]{0}', space=smem, size = 0x200, scoped, tag = 'input window, operand 4, single buffered']
    #allocation5 [shape = 's32[1]{0}', space=sflag, size = 0x4, scoped, tag = 'scoped memory for lstm_simple_forward.1']
    %13 = vsyncpa [#allocation5], 0
    // Predicated region
    $region2: #{lstm_simple_forward.1} parent=1 // pred_check
      _
    $region3: #{lstm_simple_forward.1} parent=1 // pred_check_branch
      %15 = sbr.rel (0) target = $region5
    $region4: #{lstm_simple_forward.1} parent=1 // pred_region
      _
    $region5: #{lstm_simple_forward.1} parent=1 // pred_fallthru
      _
    // Predicated region
    $region6: #{lstm_simple_forward.1} parent=1 // pred_check
      _
    $region7: #{lstm_simple_forward.1} parent=1 // pred_check_branch
      %17 = sbr.rel (0) target = $region9
    $region8: #{lstm_simple_forward.1} parent=1 // pred_region
      _
    $region9: #{lstm_simple_forward.1} parent=1 // pred_fallthru
      _
    // Predicated region
    $region10: #{lstm_simple_forward.1} parent=1 // pred_check
      _
    $region11: #{lstm_simple_forward.1} parent=1 // pred_check_branch
      %19 = sbr.rel (0) target = $region13
    $region12: #{lstm_simple_forward.1} parent=1 // pred_region
      _
    $region13: #{lstm_simple_forward.1} parent=1 // pred_fallthru
      _
    // Predicated region
    $region14: #{lstm_simple_forward.1} parent=1 // pred_check
      _
    $region15: #{lstm_simple_forward.1} parent=1 // pred_check_branch
      %21 = sbr.rel (0) target = $region17
    $region16: #{lstm_simple_forward.1} parent=1 // pred_region
      _
    $region17: #{lstm_simple_forward.1} parent=1 // pred_fallthru
      _
    // Predicated region
    $region18: #{lstm_simple_forward.1} parent=1 // pred_check
      _
    $region19: #{lstm_simple_forward.1} parent=1 // pred_check_branch
      %23 = sbr.rel (0) target = $region21
    $region20: #{lstm_simple_forward.1} parent=1 // pred_region
      %s25 = ssub.s32 16, 16
      %26 = vsyncadd [#allocation5], %s25
      %s28 = sshll.u32 %s4, 4
      %s29 = int_to_ptr.vmem [resolvable:$true] %s28
      %31 = dma.vmem_to_smem %s29, 16, [#allocation4], [#allocation5]
    $region21: #{lstm_simple_forward.1} parent=1 // pred_fallthru
      _
    // Predicated region
    $region22: #{lstm_simple_forward.1} parent=1 // pred_check
      _
    $region23: #{lstm_simple_forward.1} parent=1 // pred_check_branch
      %33 = sbr.rel (0) target = $region25
    $region24: #{lstm_simple_forward.1} parent=1 // pred_region
      _
    $region25: #{lstm_simple_forward.1} parent=1 // pred_fallthru
      _
    // Predicated region
    $region26: #{lstm_simple_forward.1} parent=1 // pred_check
      _
    $region27: #{lstm_simple_forward.1} parent=1 // pred_check_branch
      %35 = sbr.rel (0) target = $region29
    $region28: #{lstm_simple_forward.1} parent=1 // pred_region
      _
    $region29: #{lstm_simple_forward.1} parent=1 // pred_fallthru
      _
    // Predicated region
    $region30: #{lstm_simple_forward.1} parent=1 // pred_check
      _
    $region31: #{lstm_simple_forward.1} parent=1 // pred_check_branch
      %37 = sbr.rel (0) target = $region33
    $region32: #{lstm_simple_forward.1} parent=1 // pred_region
      %38 = dma.done [#allocation5], 16
    $region33: #{lstm_simple_forward.1} parent=1 // pred_fallthru
      _
    %39 = sfence
    %v40 = vld [vmem:[%s0] sm:$0xff]
    %v41 = vld [vmem:[%s0 + $0x8] sm:$0xff]
    %v42 = vld [vmem:[%s0 + $0x10] sm:$0xff]
    %v43 = vld [vmem:[%s0 + $0x18] sm:$0xff]
    %v44 = vld [vmem:[%s0 + $0x20] sm:$0xff]
    %v45 = vld [vmem:[%s0 + $0x28] sm:$0xff]
    %v46 = vld [vmem:[%s0 + $0x30] sm:$0xff]
    %v47 = vld [vmem:[%s0 + $0x38] sm:$0xff]
    %v48 = vld [vmem:[%s1] sm:$0xff]
    %v49 = vld [vmem:[%s1 + $0x8] sm:$0xf]
    %vm50 = vcmask 97280
    %v52 = vsel %vm50, %v40, 0
    %v55 = vsel %vm50, %v41, 0
    %v58 = vsel %vm50, %v42, 0
    %v61 = vsel %vm50, %v43, 0
    %v64 = vsel %vm50, %v44, 0
    %v67 = vsel %vm50, %v45, 0
    %v70 = vsel %vm50, %v46, 0
    %v73 = vsel %vm50, %v47, 0
    %vm75 = vcmask 1043456
    %v77 = vsel %vm75, %v49, 0
    %79 = vmatprep.subr.mxu0 0.0
    %80 = vmatpush1.msra.mxu0 %v48
    %81 = vmatprep.subr.mxu0 0.0
    %82 = vmatpush1.msra.mxu0 %v77
    %83 = vmatprep.subr.mxu0 0.0
    %84 = vmatpush1.msra.mxu0 0.0
    %85 = vmatprep.subr.mxu0 0.0
    %86 = vmatpush1.msra.mxu0 0.0
    %87 = vmatprep.subr.mxu0 0.0
    %88 = vmatpush1.msra.mxu0 0.0
    %89 = vmatprep.subr.mxu0 0.0
    %90 = vmatpush1.msra.mxu0 0.0
    %91 = vmatprep.subr.mxu0 0.0
    %92 = vmatpush1.msra.mxu0 0.0
    %93 = vmatprep.subr.mxu0 0.0
    %94 = vmatpush1.msra.mxu0 0.0
    %95 = vmatprep.subr.mxu0 0.0
    %96 = vmatpush1.msra.mxu0 0.0
    %97 = vmatprep.subr.mxu0 0.0
    %98 = vmatpush1.msra.mxu0 0.0
    %99 = vmatprep.subr.mxu0 0.0
    %100 = vmatpush1.msra.mxu0 0.0
    %101 = vmatprep.subr.mxu0 0.0
    %102 = vmatpush1.msra.mxu0 0.0
    %103 = vmatprep.subr.mxu0 0.0
    %104 = vmatpush1.msra.mxu0 0.0
    %105 = vmatprep.subr.mxu0 0.0
    %106 = vmatpush1.msra.mxu0 0.0
    %107 = vmatprep.subr.mxu0 0.0
    %108 = vmatpush1.msra.mxu0 0.0
    %109 = vmatprep.subr.mxu0 0.0
    %110 = vmatpush1.msra.mxu0 0.0
    %111 = vmatprep.subr.mxu0 0.0
    %112 = vmatpush1.msra.mxu0 0.0
    %113 = vmatprep.subr.mxu0 0.0
    %114 = vmatpush1.msra.mxu0 0.0
    %115 = vmatprep.subr.mxu0 0.0
    %116 = vmatpush1.msra.mxu0 0.0
    %117 = vmatprep.subr.mxu0 0.0
    %118 = vmatpush1.msra.mxu0 0.0
    %119 = vmatprep.subr.mxu0 0.0
    %120 = vmatpush1.msra.mxu0 0.0
    %121 = vmatprep.subr.mxu0 0.0
    %122 = vmatpush1.msra.mxu0 0.0
    %123 = vmatprep.subr.mxu0 0.0
    %124 = vmatpush1.msra.mxu0 0.0
    %125 = vmatprep.subr.mxu0 0.0
    %126 = vmatpush1.msra.mxu0 0.0
    %127 = vmatprep.subr.mxu0 0.0
    %128 = vmatpush1.msra.mxu0 0.0
    %129 = vmatprep.subr.mxu0 0.0
    %130 = vmatpush1.msra.mxu0 0.0
    %131 = vmatprep.subr.mxu0 0.0
    %132 = vmatpush1.msra.mxu0 0.0
    %133 = vmatprep.subr.mxu0 0.0
    %134 = vmatpush1.msra.mxu0 0.0
    %135 = vmatprep.subr.mxu0 0.0
    %136 = vmatpush1.msra.mxu0 0.0
    %137 = vmatprep.subr.mxu0 0.0
    %138 = vmatpush1.msra.mxu0 0.0
    %139 = vmatprep.subr.mxu0 0.0
    %140 = vmatpush1.msra.mxu0 0.0
    %141 = vmatprep.subr.mxu0 0.0
    %142 = vmatpush1.msra.mxu0 0.0
    %143 = vmatprep.mubr.f32.mxu0 0.0
    %144 = vmatmul.mubr.f32.gmra.mrb[0].mxu0 %v52
    %v145 = vpop.f32.mrb[0].mxu0
    %v146 = vadd.f32 0.0, %v145
    %v147 = vpop.f32.mrb[0].mxu0
    %148 = vmatprep.mubr.f32.mxu0 0.0
    %149 = vmatmul.mubr.f32.gmra.mrb[0].mxu0 %v55
    %v150 = vpop.f32.mrb[0].mxu0
    %v151 = vadd.f32 0.0, %v150
    %v152 = vpop.f32.mrb[0].mxu0
    %153 = vmatprep.mubr.f32.mxu0 0.0
    %154 = vmatmul.mubr.f32.gmra.mrb[0].mxu0 %v58
    %v155 = vpop.f32.mrb[0].mxu0
    %v156 = vadd.f32 0.0, %v155
    %v157 = vpop.f32.mrb[0].mxu0
    %158 = vmatprep.mubr.f32.mxu0 0.0
    %159 = vmatmul.mubr.f32.gmra.mrb[0].mxu0 %v61
    %v160 = vpop.f32.mrb[0].mxu0
    %v161 = vadd.f32 0.0, %v160
    %v162 = vpop.f32.mrb[0].mxu0
    %163 = vmatprep.mubr.f32.mxu0 0.0
    %164 = vmatmul.mubr.f32.gmra.mrb[0].mxu0 %v64
    %v165 = vpop.f32.mrb[0].mxu0
    %v166 = vadd.f32 0.0, %v165
    %v167 = vpop.f32.mrb[0].mxu0
    %168 = vmatprep.mubr.f32.mxu0 0.0
    %169 = vmatmul.mubr.f32.gmra.mrb[0].mxu0 %v67
    %v170 = vpop.f32.mrb[0].mxu0
    %v171 = vadd.f32 0.0, %v170
    %v172 = vpop.f32.mrb[0].mxu0
    %173 = vmatprep.mubr.f32.mxu0 0.0
    %174 = vmatmul.mubr.f32.gmra.mrb[0].mxu0 %v70
    %v175 = vpop.f32.mrb[0].mxu0
    %v176 = vadd.f32 0.0, %v175
    %v177 = vpop.f32.mrb[0].mxu0
    %178 = vmatprep.mubr.f32.mxu0 0.0
    %179 = vmatmul.mubr.f32.gmra.mrb[0].mxu0 %v73
    %v180 = vpop.f32.mrb[0].mxu0
    %v181 = vadd.f32 0.0, %v180
    %v182 = vpop.f32.mrb[0].mxu0
    %183 = vdwg.mxu0
    %184 = vst [vmem:[#allocation2] sm:$0xff] %v146
    %185 = vst [vmem:[#allocation2 + $0x8] sm:$0xff] %v151
    %186 = vst [vmem:[#allocation2 + $0x10] sm:$0xff] %v156
    %187 = vst [vmem:[#allocation2 + $0x18] sm:$0xff] %v161
    %188 = vst [vmem:[#allocation2 + $0x20] sm:$0xff] %v166
    %189 = vst [vmem:[#allocation2 + $0x28] sm:$0xff] %v171
    %190 = vst [vmem:[#allocation2 + $0x30] sm:$0xff] %v176
    %191 = vst [vmem:[#allocation2 + $0x38] sm:$0xff] %v181
    %v192 = vld [vmem:[%s2] sm:$0xff]
    %v193 = vld [vmem:[%s2 + $0x8] sm:$0xff]
    %v194 = vld [vmem:[%s2 + $0x10] sm:$0xff]
    %v195 = vld [vmem:[%s2 + $0x18] sm:$0xff]
    %v196 = vld [vmem:[%s2 + $0x20] sm:$0xff]
    %v197 = vld [vmem:[%s2 + $0x28] sm:$0xff]
    %v198 = vld [vmem:[%s2 + $0x30] sm:$0xff]
    %v199 = vld [vmem:[%s2 + $0x38] sm:$0xff]
    %v200 = vld [vmem:[%s2 + $0x40] sm:$0xff]
    %v201 = vld [vmem:[%s2 + $0x48] sm:$0xff]
    %v202 = vld [vmem:[%s2 + $0x50] sm:$0xff]
    %v203 = vld [vmem:[%s2 + $0x58] sm:$0xff]
    %v204 = vld [vmem:[%s2 + $0x60] sm:$0xff]
    %v205 = vld [vmem:[%s2 + $0x68] sm:$0xff]
    %v206 = vld [vmem:[%s2 + $0x70] sm:$0xff]
    %v207 = vld [vmem:[%s2 + $0x78] sm:$0xff]
    %v208 = vld [vmem:[%s2 + $0x80] sm:$0xff]
    %v209 = vld [vmem:[%s2 + $0x88] sm:$0xff]
    %v210 = vld [vmem:[%s2 + $0x90] sm:$0xff]
    %v211 = vld [vmem:[%s2 + $0x98] sm:$0xff]
    %v212 = vld [vmem:[%s2 + $0xa0] sm:$0xff]
    %v213 = vld [vmem:[%s2 + $0xa8] sm:$0xff]
    %v214 = vld [vmem:[%s2 + $0xb0] sm:$0xff]
    %v215 = vld [vmem:[%s2 + $0xb8] sm:$0xff]
    %vm216 = vcmask 785408
    %v218 = vsel %vm216, 0.0, 0
    %220 = vmatprep.subr.mxu0 %v193
    %221 = vmatpush1.msra.mxu0 %v192
    %222 = vmatprep.subr.mxu0 %v195
    %223 = vmatpush1.msra.mxu0 %v194
    %224 = vmatprep.subr.mxu0 %v197
    %225 = vmatpush1.msra.mxu0 %v196
    %226 = vmatprep.subr.mxu0 %v199
    %227 = vmatpush1.msra.mxu0 %v198
    %228 = vmatprep.subr.mxu0 %v201
    %229 = vmatpush1.msra.mxu0 %v200
    %230 = vmatprep.subr.mxu0 %v203
    %231 = vmatpush1.msra.mxu0 %v202
    %232 = vmatprep.subr.mxu0 %v205
    %233 = vmatpush1.msra.mxu0 %v204
    %234 = vmatprep.subr.mxu0 %v207
    %235 = vmatpush1.msra.mxu0 %v206
    %236 = vmatprep.subr.mxu0 %v209
    %237 = vmatpush1.msra.mxu0 %v208
    %238 = vmatprep.subr.mxu0 %v211
    %239 = vmatpush1.msra.mxu0 %v210
    %240 = vmatprep.subr.mxu0 %v213
    %241 = vmatpush1.msra.mxu0 %v212
    %242 = vmatprep.subr.mxu0 %v215
    %243 = vmatpush1.msra.mxu0 %v214
    %244 = vmatprep.subr.mxu0 0.0
    %245 = vmatpush1.msra.mxu0 0.0
    %246 = vmatprep.subr.mxu0 0.0
    %247 = vmatpush1.msra.mxu0 0.0
    %248 = vmatprep.subr.mxu0 0.0
    %249 = vmatpush1.msra.mxu0 0.0
    %250 = vmatprep.subr.mxu0 0.0
    %251 = vmatpush1.msra.mxu0 0.0
    %252 = vmatprep.subr.mxu0 0.0
    %253 = vmatpush1.msra.mxu0 0.0
    %254 = vmatprep.subr.mxu0 0.0
    %255 = vmatpush1.msra.mxu0 0.0
    %256 = vmatprep.subr.mxu0 0.0
    %257 = vmatpush1.msra.mxu0 0.0
    %258 = vmatprep.subr.mxu0 0.0
    %259 = vmatpush1.msra.mxu0 0.0
    %260 = vmatprep.subr.mxu0 0.0
    %261 = vmatpush1.msra.mxu0 0.0
    %262 = vmatprep.subr.mxu0 0.0
    %263 = vmatpush1.msra.mxu0 0.0
    %264 = vmatprep.subr.mxu0 0.0
    %265 = vmatpush1.msra.mxu0 0.0
    %266 = vmatprep.subr.mxu0 0.0
    %267 = vmatpush1.msra.mxu0 0.0
    %268 = vmatprep.subr.mxu0 0.0
    %269 = vmatpush1.msra.mxu0 0.0
    %270 = vmatprep.subr.mxu0 0.0
    %271 = vmatpush1.msra.mxu0 0.0
    %272 = vmatprep.subr.mxu0 0.0
    %273 = vmatpush1.msra.mxu0 0.0
    %274 = vmatprep.subr.mxu0 0.0
    %275 = vmatpush1.msra.mxu0 0.0
    %276 = vmatprep.subr.mxu0 0.0
    %277 = vmatpush1.msra.mxu0 0.0
    %278 = vmatprep.subr.mxu0 0.0
    %279 = vmatpush1.msra.mxu0 0.0
    %280 = vmatprep.subr.mxu0 0.0
    %281 = vmatpush1.msra.mxu0 0.0
    %282 = vmatprep.subr.mxu0 0.0
    %283 = vmatpush1.msra.mxu0 0.0
    %284 = vmatprep.mubr.f32.mxu0 0.0
    %285 = vmatmul.mubr.f32.gmra.mrb[0].mxu0 %v218
    %v286 = vpop.f32.mrb[0].mxu0
    %v287 = vadd.f32 0.0, %v286
    %v288 = vpop.f32.mrb[0].mxu0
    %289 = vdwg.mxu0
    %v290 = vld [vmem:[#allocation2] sm:$0xff]
    %v291 = vadd.f32 %v287, %v290
    %v292 = vxor.u32 %v291, 2147483648
    %v293 = vmul.f32 %v292, 1.442695
    %v294 = vpow.pop %v293
    %v295 = vadd.f32 %v294, 1.0
    %v296 = vrcp.pop %v295
    %v297 = vmul.f32 1.0, %v296
    %v298 = vtanh.pop %v291
    %v299 = vmul.f32 %v297, 0.0
    %301 = vrot.lane.b32.xlu0 %v298, 64
    %v302 = vpop.permute.xlu0 %301
    %v304 = vmul.f32 %v297, %v302
    %306 = vrot.lane.b32.xlu0 %v304, 32
    %v307 = vpop.permute.xlu0 %306
    %v309 = vadd.f32 %v299, %v307
    %v310 = vtanh.pop %v309
    %312 = vrot.lane.b32.xlu0 %v310, 64
    %v313 = vpop.permute.xlu0 %312
    %v315 = vmul.f32 %v297, %v313
    %s316 = sld [smem:[#allocation4]]
    %v317 = vstv %s316
    %v318 = vmul.f32 %v315, %v317
    %320 = vrot.lane.b32.xlu0 %v315, 32
    %v321 = vpop.permute.xlu0 %320
    %324 = vrot.lane.b32.xlu0 %v318, 64
    %v325 = vpop.permute.xlu0 %324
    %vm327 = vcmask 261120
    %v328 = vsel %vm327, %v321, %v325
    %vm329 = vcmask 523264
    %v330 = vsel %vm329, %v328, 0.0
    %v332 = vsel %vm216, %v330, 0
    %334 = vmatprep.subr.mxu0 %v193
    %335 = vmatpush1.msra.mxu0 %v192
    %336 = vmatprep.subr.mxu0 %v195
    %337 = vmatpush1.msra.mxu0 %v194
    %338 = vmatprep.subr.mxu0 %v197
    %339 = vmatpush1.msra.mxu0 %v196
    %340 = vmatprep.subr.mxu0 %v199
    %341 = vmatpush1.msra.mxu0 %v198
    %342 = vmatprep.subr.mxu0 %v201
    %343 = vmatpush1.msra.mxu0 %v200
    %344 = vmatprep.subr.mxu0 %v203
    %345 = vmatpush1.msra.mxu0 %v202
    %346 = vmatprep.subr.mxu0 %v205
    %347 = vmatpush1.msra.mxu0 %v204
    %348 = vmatprep.subr.mxu0 %v207
    %349 = vmatpush1.msra.mxu0 %v206
    %350 = vmatprep.subr.mxu0 %v209
    %351 = vmatpush1.msra.mxu0 %v208
    %352 = vmatprep.subr.mxu0 %v211
    %353 = vmatpush1.msra.mxu0 %v210
    %354 = vmatprep.subr.mxu0 %v213
    %355 = vmatpush1.msra.mxu0 %v212
    %356 = vmatprep.subr.mxu0 %v215
    %357 = vmatpush1.msra.mxu0 %v214
    %358 = vmatprep.subr.mxu0 0.0
    %359 = vmatpush1.msra.mxu0 0.0
    %360 = vmatprep.subr.mxu0 0.0
    %361 = vmatpush1.msra.mxu0 0.0
    %362 = vmatprep.subr.mxu0 0.0
    %363 = vmatpush1.msra.mxu0 0.0
    %364 = vmatprep.subr.mxu0 0.0
    %365 = vmatpush1.msra.mxu0 0.0
    %366 = vmatprep.subr.mxu0 0.0
    %367 = vmatpush1.msra.mxu0 0.0
    %368 = vmatprep.subr.mxu0 0.0
    %369 = vmatpush1.msra.mxu0 0.0
    %370 = vmatprep.subr.mxu0 0.0
    %371 = vmatpush1.msra.mxu0 0.0
    %372 = vmatprep.subr.mxu0 0.0
    %373 = vmatpush1.msra.mxu0 0.0
    %374 = vmatprep.subr.mxu0 0.0
    %375 = vmatpush1.msra.mxu0 0.0
    %376 = vmatprep.subr.mxu0 0.0
    %377 = vmatpush1.msra.mxu0 0.0
    %378 = vmatprep.subr.mxu0 0.0
    %379 = vmatpush1.msra.mxu0 0.0
    %380 = vmatprep.subr.mxu0 0.0
    %381 = vmatpush1.msra.mxu0 0.0
    %382 = vmatprep.subr.mxu0 0.0
    %383 = vmatpush1.msra.mxu0 0.0
    %384 = vmatprep.subr.mxu0 0.0
    %385 = vmatpush1.msra.mxu0 0.0
    %386 = vmatprep.subr.mxu0 0.0
    %387 = vmatpush1.msra.mxu0 0.0
    %388 = vmatprep.subr.mxu0 0.0
    %389 = vmatpush1.msra.mxu0 0.0
    %390 = vmatprep.subr.mxu0 0.0
    %391 = vmatpush1.msra.mxu0 0.0
    %392 = vmatprep.subr.mxu0 0.0
    %393 = vmatpush1.msra.mxu0 0.0
    %394 = vmatprep.subr.mxu0 0.0
    %395 = vmatpush1.msra.mxu0 0.0
    %396 = vmatprep.subr.mxu0 0.0
    %397 = vmatpush1.msra.mxu0 0.0
    %398 = vmatprep.mubr.f32.mxu0 0.0
    %399 = vmatmul.mubr.f32.gmra.mrb[0].mxu0 %v332
    %v400 = vpop.f32.mrb[0].mxu0
    %v401 = vadd.f32 0.0, %v400
    %v402 = vpop.f32.mrb[0].mxu0
    %v403 = vadd.f32 0.0, %v402
    %404 = vdwg.mxu0
    %v405 = vld [vmem:[%s3] sm:$0xff]
    %v406 = vadd.f32 %v403, %v405
    %v407 = vxor.u32 %v406, 2147483648
    %v408 = vmul.f32 %v407, 1.442695
    %v409 = vpow.pop %v408
    %v410 = vadd.f32 %v409, 1.0
    %v411 = vrcp.pop %v410
    %v412 = vmul.f32 1.0, %v411
    %v413 = vtanh.pop %v406
    %v414 = vmul.f32 %v412, 0.0
    %416 = vrot.lane.b32.xlu0 %v413, 64
    %v417 = vpop.permute.xlu0 %416
    %v419 = vmul.f32 %v412, %v417
    %421 = vrot.lane.b32.xlu0 %v419, 32
    %v422 = vpop.permute.xlu0 %421
    %v424 = vadd.f32 %v414, %v422
    %v425 = vtanh.pop %v424
    %427 = vrot.lane.b32.xlu0 %v425, 64
    %v428 = vpop.permute.xlu0 %427
    %v430 = vmul.f32 %v412, %v428
    %v431 = vld [vmem:[#allocation2 + $0x8] sm:$0xff]
    %v432 = vadd.f32 %v401, %v431
    %v433 = vxor.u32 %v432, 2147483648
    %v434 = vmul.f32 %v433, 1.442695
    %v435 = vpow.pop %v434
    %v436 = vadd.f32 %v435, 1.0
    %v437 = vrcp.pop %v436
    %v438 = vmul.f32 1.0, %v437
    %v439 = vtanh.pop %v432
    %v440 = vmul.f32 %v438, %v309
    %442 = vrot.lane.b32.xlu0 %v439, 64
    %v443 = vpop.permute.xlu0 %442
    %v445 = vmul.f32 %v438, %v443
    %447 = vrot.lane.b32.xlu0 %v445, 32
    %v448 = vpop.permute.xlu0 %447
    %v450 = vadd.f32 %v440, %v448
    %v451 = vtanh.pop %v450
    %453 = vrot.lane.b32.xlu0 %v451, 64
    %v454 = vpop.permute.xlu0 %453
    %v456 = vmul.f32 %v438, %v454
    %s457 = sld [smem:[#allocation4 + $0x1]]
    %v458 = vstv %s457
    %v459 = vmul.f32 %v456, %v458
    %461 = vrot.lane.b32.xlu0 %v456, 32
    %v462 = vpop.permute.xlu0 %461
    %465 = vrot.lane.b32.xlu0 %v459, 64
    %v466 = vpop.permute.xlu0 %465
    %469 = vrot.lane.b32.xlu0 %v430, 96
    %v470 = vpop.permute.xlu0 %469
    %v472 = vsel %vm327, %v462, %v466
    %v473 = vsel %vm329, %v472, %v470
    %v475 = vsel %vm216, %v473, 0
    %477 = vmatprep.subr.mxu0 %v193
    %478 = vmatpush1.msra.mxu0 %v192
    %479 = vmatprep.subr.mxu0 %v195
    %480 = vmatpush1.msra.mxu0 %v194
    %481 = vmatprep.subr.mxu0 %v197
    %482 = vmatpush1.msra.mxu0 %v196
    %483 = vmatprep.subr.mxu0 %v199
    %484 = vmatpush1.msra.mxu0 %v198
    %485 = vmatprep.subr.mxu0 %v201
    %486 = vmatpush1.msra.mxu0 %v200
    %487 = vmatprep.subr.mxu0 %v203
    %488 = vmatpush1.msra.mxu0 %v202
    %489 = vmatprep.subr.mxu0 %v205
    %490 = vmatpush1.msra.mxu0 %v204
    %491 = vmatprep.subr.mxu0 %v207
    %492 = vmatpush1.msra.mxu0 %v206
    %493 = vmatprep.subr.mxu0 %v209
    %494 = vmatpush1.msra.mxu0 %v208
    %495 = vmatprep.subr.mxu0 %v211
    %496 = vmatpush1.msra.mxu0 %v210
    %497 = vmatprep.subr.mxu0 %v213
    %498 = vmatpush1.msra.mxu0 %v212
    %499 = vmatprep.subr.mxu0 %v215
    %500 = vmatpush1.msra.mxu0 %v214
    %501 = vmatprep.subr.mxu0 0.0
    %502 = vmatpush1.msra.mxu0 0.0
    %503 = vmatprep.subr.mxu0 0.0
    %504 = vmatpush1.msra.mxu0 0.0
    %505 = vmatprep.subr.mxu0 0.0
    %506 = vmatpush1.msra.mxu0 0.0
    %507 = vmatprep.subr.mxu0 0.0
    %508 = vmatpush1.msra.mxu0 0.0
    %509 = vmatprep.subr.mxu0 0.0
    %510 = vmatpush1.msra.mxu0 0.0
    %511 = vmatprep.subr.mxu0 0.0
    %512 = vmatpush1.msra.mxu0 0.0
    %513 = vmatprep.subr.mxu0 0.0
    %514 = vmatpush1.msra.mxu0 0.0
    %515 = vmatprep.subr.mxu0 0.0
    %516 = vmatpush1.msra.mxu0 0.0
    %517 = vmatprep.subr.mxu0 0.0
    %518 = vmatpush1.msra.mxu0 0.0
    %519 = vmatprep.subr.mxu0 0.0
    %520 = vmatpush1.msra.mxu0 0.0
    %521 = vmatprep.subr.mxu0 0.0
    %522 = vmatpush1.msra.mxu0 0.0
    %523 = vmatprep.subr.mxu0 0.0
    %524 = vmatpush1.msra.mxu0 0.0
    %525 = vmatprep.subr.mxu0 0.0
    %526 = vmatpush1.msra.mxu0 0.0
    %527 = vmatprep.subr.mxu0 0.0
    %528 = vmatpush1.msra.mxu0 0.0
    %529 = vmatprep.subr.mxu0 0.0
    %530 = vmatpush1.msra.mxu0 0.0
    %531 = vmatprep.subr.mxu0 0.0
    %532 = vmatpush1.msra.mxu0 0.0
    %533 = vmatprep.subr.mxu0 0.0
    %534 = vmatpush1.msra.mxu0 0.0
    %535 = vmatprep.subr.mxu0 0.0
    %536 = vmatpush1.msra.mxu0 0.0
    %537 = vmatprep.subr.mxu0 0.0
    %538 = vmatpush1.msra.mxu0 0.0
    %539 = vmatprep.subr.mxu0 0.0
    %540 = vmatpush1.msra.mxu0 0.0
    %541 = vmatprep.mubr.f32.mxu0 0.0
    %542 = vmatmul.mubr.f32.gmra.mrb[0].mxu0 %v475
    %v543 = vpop.f32.mrb[0].mxu0
    %v544 = vadd.f32 0.0, %v543
    %v545 = vpop.f32.mrb[0].mxu0
    %v546 = vadd.f32 0.0, %v545
    %547 = vdwg.mxu0
    %v548 = vld [vmem:[%s3 + $0x8] sm:$0xff]
    %v549 = vadd.f32 %v546, %v548
    %v550 = vxor.u32 %v549, 2147483648
    %v551 = vmul.f32 %v550, 1.442695
    %v552 = vpow.pop %v551
    %v553 = vadd.f32 %v552, 1.0
    %v554 = vrcp.pop %v553
    %v555 = vmul.f32 1.0, %v554
    %v556 = vtanh.pop %v549
    %v557 = vmul.f32 %v555, %v424
    %559 = vrot.lane.b32.xlu0 %v556, 64
    %v560 = vpop.permute.xlu0 %559
    %v562 = vmul.f32 %v555, %v560
    %564 = vrot.lane.b32.xlu0 %v562, 32
    %v565 = vpop.permute.xlu0 %564
    %v567 = vadd.f32 %v557, %v565
    %v568 = vtanh.pop %v567
    %570 = vrot.lane.b32.xlu0 %v568, 64
    %v571 = vpop.permute.xlu0 %570
    %v573 = vmul.f32 %v555, %v571
    %v574 = vld [vmem:[#allocation2 + $0x10] sm:$0xff]
    %v575 = vadd.f32 %v544, %v574
    %v576 = vxor.u32 %v575, 2147483648
    %v577 = vmul.f32 %v576, 1.442695
    %v578 = vpow.pop %v577
    %v579 = vadd.f32 %v578, 1.0
    %v580 = vrcp.pop %v579
    %v581 = vmul.f32 1.0, %v580
    %v582 = vtanh.pop %v575
    %v583 = vmul.f32 %v581, %v450
    %585 = vrot.lane.b32.xlu0 %v582, 64
    %v586 = vpop.permute.xlu0 %585
    %v588 = vmul.f32 %v581, %v586
    %590 = vrot.lane.b32.xlu0 %v588, 32
    %v591 = vpop.permute.xlu0 %590
    %v593 = vadd.f32 %v583, %v591
    %v594 = vtanh.pop %v593
    %596 = vrot.lane.b32.xlu0 %v594, 64
    %v597 = vpop.permute.xlu0 %596
    %v599 = vmul.f32 %v581, %v597
    %s600 = sld [smem:[#allocation4 + $0x2]]
    %v601 = vstv %s600
    %v602 = vmul.f32 %v599, %v601
    %604 = vrot.lane.b32.xlu0 %v599, 32
    %v605 = vpop.permute.xlu0 %604
    %608 = vrot.lane.b32.xlu0 %v602, 64
    %v609 = vpop.permute.xlu0 %608
    %612 = vrot.lane.b32.xlu0 %v573, 96
    %v613 = vpop.permute.xlu0 %612
    %v615 = vsel %vm327, %v605, %v609
    %v616 = vsel %vm329, %v615, %v613
    %v618 = vsel %vm216, %v616, 0
    %620 = vmatprep.subr.mxu0 %v193
    %621 = vmatpush1.msra.mxu0 %v192
    %622 = vmatprep.subr.mxu0 %v195
    %623 = vmatpush1.msra.mxu0 %v194
    %624 = vmatprep.subr.mxu0 %v197
    %625 = vmatpush1.msra.mxu0 %v196
    %626 = vmatprep.subr.mxu0 %v199
    %627 = vmatpush1.msra.mxu0 %v198
    %628 = vmatprep.subr.mxu0 %v201
    %629 = vmatpush1.msra.mxu0 %v200
    %630 = vmatprep.subr.mxu0 %v203
    %631 = vmatpush1.msra.mxu0 %v202
    %632 = vmatprep.subr.mxu0 %v205
    %633 = vmatpush1.msra.mxu0 %v204
    %634 = vmatprep.subr.mxu0 %v207
    %635 = vmatpush1.msra.mxu0 %v206
    %636 = vmatprep.subr.mxu0 %v209
    %637 = vmatpush1.msra.mxu0 %v208
    %638 = vmatprep.subr.mxu0 %v211
    %639 = vmatpush1.msra.mxu0 %v210
    %640 = vmatprep.subr.mxu0 %v213
    %641 = vmatpush1.msra.mxu0 %v212
    %642 = vmatprep.subr.mxu0 %v215
    %643 = vmatpush1.msra.mxu0 %v214
    %644 = vmatprep.subr.mxu0 0.0
    %645 = vmatpush1.msra.mxu0 0.0
    %646 = vmatprep.subr.mxu0 0.0
    %647 = vmatpush1.msra.mxu0 0.0
    %648 = vmatprep.subr.mxu0 0.0
    %649 = vmatpush1.msra.mxu0 0.0
    %650 = vmatprep.subr.mxu0 0.0
    %651 = vmatpush1.msra.mxu0 0.0
    %652 = vmatprep.subr.mxu0 0.0
    %653 = vmatpush1.msra.mxu0 0.0
    %654 = vmatprep.subr.mxu0 0.0
    %655 = vmatpush1.msra.mxu0 0.0
    %656 = vmatprep.subr.mxu0 0.0
    %657 = vmatpush1.msra.mxu0 0.0
    %658 = vmatprep.subr.mxu0 0.0
    %659 = vmatpush1.msra.mxu0 0.0
    %660 = vmatprep.subr.mxu0 0.0
    %661 = vmatpush1.msra.mxu0 0.0
    %662 = vmatprep.subr.mxu0 0.0
    %663 = vmatpush1.msra.mxu0 0.0
    %664 = vmatprep.subr.mxu0 0.0
    %665 = vmatpush1.msra.mxu0 0.0
    %666 = vmatprep.subr.mxu0 0.0
    %667 = vmatpush1.msra.mxu0 0.0
    %668 = vmatprep.subr.mxu0 0.0
    %669 = vmatpush1.msra.mxu0 0.0
    %670 = vmatprep.subr.mxu0 0.0
    %671 = vmatpush1.msra.mxu0 0.0
    %672 = vmatprep.subr.mxu0 0.0
    %673 = vmatpush1.msra.mxu0 0.0
    %674 = vmatprep.subr.mxu0 0.0
    %675 = vmatpush1.msra.mxu0 0.0
    %676 = vmatprep.subr.mxu0 0.0
    %677 = vmatpush1.msra.mxu0 0.0
    %678 = vmatprep.subr.mxu0 0.0
    %679 = vmatpush1.msra.mxu0 0.0
    %680 = vmatprep.subr.mxu0 0.0
    %681 = vmatpush1.msra.mxu0 0.0
    %682 = vmatprep.subr.mxu0 0.0
    %683 = vmatpush1.msra.mxu0 0.0
    %684 = vmatprep.mubr.f32.mxu0 0.0
    %685 = vmatmul.mubr.f32.gmra.mrb[0].mxu0 %v618
    %v686 = vpop.f32.mrb[0].mxu0
    %v687 = vadd.f32 0.0, %v686
    %v688 = vpop.f32.mrb[0].mxu0
    %v689 = vadd.f32 0.0, %v688
    %690 = vdwg.mxu0
    %v691 = vld [vmem:[%s3 + $0x10] sm:$0xff]
    %v692 = vadd.f32 %v689, %v691
    %v693 = vxor.u32 %v692, 2147483648
    %v694 = vmul.f32 %v693, 1.442695
    %v695 = vpow.pop %v694
    %v696 = vadd.f32 %v695, 1.0
    %v697 = vrcp.pop %v696
    %v698 = vmul.f32 1.0, %v697
    %v699 = vtanh.pop %v692
    %v700 = vmul.f32 %v698, %v567
    %702 = vrot.lane.b32.xlu0 %v699, 64
    %v703 = vpop.permute.xlu0 %702
    %v705 = vmul.f32 %v698, %v703
    %707 = vrot.lane.b32.xlu0 %v705, 32
    %v708 = vpop.permute.xlu0 %707
    %v710 = vadd.f32 %v700, %v708
    %v711 = vtanh.pop %v710
    %713 = vrot.lane.b32.xlu0 %v711, 64
    %v714 = vpop.permute.xlu0 %713
    %v716 = vmul.f32 %v698, %v714
    %v717 = vld [vmem:[#allocation2 + $0x18] sm:$0xff]
    %v718 = vadd.f32 %v687, %v717
    %v719 = vxor.u32 %v718, 2147483648
    %v720 = vmul.f32 %v719, 1.442695
    %v721 = vpow.pop %v720
    %v722 = vadd.f32 %v721, 1.0
    %v723 = vrcp.pop %v722
    %v724 = vmul.f32 1.0, %v723
    %v725 = vtanh.pop %v718
    %v726 = vmul.f32 %v724, %v593
    %728 = vrot.lane.b32.xlu0 %v725, 64
    %v729 = vpop.permute.xlu0 %728
    %v731 = vmul.f32 %v724, %v729
    %733 = vrot.lane.b32.xlu0 %v731, 32
    %v734 = vpop.permute.xlu0 %733
    %v736 = vadd.f32 %v726, %v734
    %v737 = vtanh.pop %v736
    %739 = vrot.lane.b32.xlu0 %v737, 64
    %v740 = vpop.permute.xlu0 %739
    %v742 = vmul.f32 %v724, %v740
    %s743 = sld [smem:[#allocation4 + $0x3]]
    %v744 = vstv %s743
    %v745 = vmul.f32 %v742, %v744
    %747 = vrot.lane.b32.xlu0 %v742, 32
    %v748 = vpop.permute.xlu0 %747
    %751 = vrot.lane.b32.xlu0 %v745, 64
    %v752 = vpop.permute.xlu0 %751
    %755 = vrot.lane.b32.xlu0 %v716, 96
    %v756 = vpop.permute.xlu0 %755
    %v758 = vsel %vm327, %v748, %v752
    %v759 = vsel %vm329, %v758, %v756
    %v761 = vsel %vm216, %v759, 0
    %763 = vmatprep.subr.mxu0 %v193
    %764 = vmatpush1.msra.mxu0 %v192
    %765 = vmatprep.subr.mxu0 %v195
    %766 = vmatpush1.msra.mxu0 %v194
    %767 = vmatprep.subr.mxu0 %v197
    %768 = vmatpush1.msra.mxu0 %v196
    %769 = vmatprep.subr.mxu0 %v199
    %770 = vmatpush1.msra.mxu0 %v198
    %771 = vmatprep.subr.mxu0 %v201
    %772 = vmatpush1.msra.mxu0 %v200
    %773 = vmatprep.subr.mxu0 %v203
    %774 = vmatpush1.msra.mxu0 %v202
    %775 = vmatprep.subr.mxu0 %v205
    %776 = vmatpush1.msra.mxu0 %v204
    %777 = vmatprep.subr.mxu0 %v207
    %778 = vmatpush1.msra.mxu0 %v206
    %779 = vmatprep.subr.mxu0 %v209
    %780 = vmatpush1.msra.mxu0 %v208
    %781 = vmatprep.subr.mxu0 %v211
    %782 = vmatpush1.msra.mxu0 %v210
    %783 = vmatprep.subr.mxu0 %v213
    %784 = vmatpush1.msra.mxu0 %v212
    %785 = vmatprep.subr.mxu0 %v215
    %786 = vmatpush1.msra.mxu0 %v214
    %787 = vmatprep.subr.mxu0 0.0
    %788 = vmatpush1.msra.mxu0 0.0
    %789 = vmatprep.subr.mxu0 0.0
    %790 = vmatpush1.msra.mxu0 0.0
    %791 = vmatprep.subr.mxu0 0.0
    %792 = vmatpush1.msra.mxu0 0.0
    %793 = vmatprep.subr.mxu0 0.0
    %794 = vmatpush1.msra.mxu0 0.0
    %795 = vmatprep.subr.mxu0 0.0
    %796 = vmatpush1.msra.mxu0 0.0
    %797 = vmatprep.subr.mxu0 0.0
    %798 = vmatpush1.msra.mxu0 0.0
    %799 = vmatprep.subr.mxu0 0.0
    %800 = vmatpush1.msra.mxu0 0.0
    %801 = vmatprep.subr.mxu0 0.0
    %802 = vmatpush1.msra.mxu0 0.0
    %803 = vmatprep.subr.mxu0 0.0
    %804 = vmatpush1.msra.mxu0 0.0
    %805 = vmatprep.subr.mxu0 0.0
    %806 = vmatpush1.msra.mxu0 0.0
    %807 = vmatprep.subr.mxu0 0.0
    %808 = vmatpush1.msra.mxu0 0.0
    %809 = vmatprep.subr.mxu0 0.0
    %810 = vmatpush1.msra.mxu0 0.0
    %811 = vmatprep.subr.mxu0 0.0
    %812 = vmatpush1.msra.mxu0 0.0
    %813 = vmatprep.subr.mxu0 0.0
    %814 = vmatpush1.msra.mxu0 0.0
    %815 = vmatprep.subr.mxu0 0.0
    %816 = vmatpush1.msra.mxu0 0.0
    %817 = vmatprep.subr.mxu0 0.0
    %818 = vmatpush1.msra.mxu0 0.0
    %819 = vmatprep.subr.mxu0 0.0
    %820 = vmatpush1.msra.mxu0 0.0
    %821 = vmatprep.subr.mxu0 0.0
    %822 = vmatpush1.msra.mxu0 0.0
    %823 = vmatprep.subr.mxu0 0.0
    %824 = vmatpush1.msra.mxu0 0.0
    %825 = vmatprep.subr.mxu0 0.0
    %826 = vmatpush1.msra.mxu0 0.0
    %827 = vmatprep.mubr.f32.mxu0 0.0
    %828 = vmatmul.mubr.f32.gmra.mrb[0].mxu0 %v761
    %v829 = vpop.f32.mrb[0].mxu0
    %v830 = vadd.f32 0.0, %v829
    %v831 = vpop.f32.mrb[0].mxu0
    %v832 = vadd.f32 0.0, %v831
    %833 = vdwg.mxu0
    %v834 = vld [vmem:[%s3 + $0x18] sm:$0xff]
    %v835 = vadd.f32 %v832, %v834
    %v836 = vxor.u32 %v835, 2147483648
    %v837 = vmul.f32 %v836, 1.442695
    %v838 = vpow.pop %v837
    %v839 = vadd.f32 %v838, 1.0
    %v840 = vrcp.pop %v839
    %v841 = vmul.f32 1.0, %v840
    %v842 = vtanh.pop %v835
    %v843 = vmul.f32 %v841, %v710
    %845 = vrot.lane.b32.xlu0 %v842, 64
    %v846 = vpop.permute.xlu0 %845
    %v848 = vmul.f32 %v841, %v846
    %850 = vrot.lane.b32.xlu0 %v848, 32
    %v851 = vpop.permute.xlu0 %850
    %v853 = vadd.f32 %v843, %v851
    %v854 = vtanh.pop %v853
    %856 = vrot.lane.b32.xlu0 %v854, 64
    %v857 = vpop.permute.xlu0 %856
    %v859 = vmul.f32 %v841, %v857
    %v860 = vld [vmem:[#allocation2 + $0x20] sm:$0xff]
    %v861 = vadd.f32 %v830, %v860
    %v862 = vxor.u32 %v861, 2147483648
    %v863 = vmul.f32 %v862, 1.442695
    %v864 = vpow.pop %v863
    %v865 = vadd.f32 %v864, 1.0
    %v866 = vrcp.pop %v865
    %v867 = vmul.f32 1.0, %v866
    %v868 = vtanh.pop %v861
    %v869 = vmul.f32 %v867, %v736
    %871 = vrot.lane.b32.xlu0 %v868, 64
    %v872 = vpop.permute.xlu0 %871
    %v874 = vmul.f32 %v867, %v872
    %876 = vrot.lane.b32.xlu0 %v874, 32
    %v877 = vpop.permute.xlu0 %876
    %v879 = vadd.f32 %v869, %v877
    %v880 = vtanh.pop %v879
    %882 = vrot.lane.b32.xlu0 %v880, 64
    %v883 = vpop.permute.xlu0 %882
    %v885 = vmul.f32 %v867, %v883
    %s886 = sld [smem:[#allocation4 + $0x4]]
    %v887 = vstv %s886
    %v888 = vmul.f32 %v885, %v887
    %890 = vrot.lane.b32.xlu0 %v885, 32
    %v891 = vpop.permute.xlu0 %890
    %894 = vrot.lane.b32.xlu0 %v888, 64
    %v895 = vpop.permute.xlu0 %894
    %898 = vrot.lane.b32.xlu0 %v859, 96
    %v899 = vpop.permute.xlu0 %898
    %v901 = vsel %vm327, %v891, %v895
    %v902 = vsel %vm329, %v901, %v899
    %v904 = vsel %vm216, %v902, 0
    %906 = vmatprep.subr.mxu0 %v193
    %907 = vmatpush1.msra.mxu0 %v192
    %908 = vmatprep.subr.mxu0 %v195
    %909 = vmatpush1.msra.mxu0 %v194
    %910 = vmatprep.subr.mxu0 %v197
    %911 = vmatpush1.msra.mxu0 %v196
    %912 = vmatprep.subr.mxu0 %v199
    %913 = vmatpush1.msra.mxu0 %v198
    %914 = vmatprep.subr.mxu0 %v201
    %915 = vmatpush1.msra.mxu0 %v200
    %916 = vmatprep.subr.mxu0 %v203
    %917 = vmatpush1.msra.mxu0 %v202
    %918 = vmatprep.subr.mxu0 %v205
    %919 = vmatpush1.msra.mxu0 %v204
    %920 = vmatprep.subr.mxu0 %v207
    %921 = vmatpush1.msra.mxu0 %v206
    %922 = vmatprep.subr.mxu0 %v209
    %923 = vmatpush1.msra.mxu0 %v208
    %924 = vmatprep.subr.mxu0 %v211
    %925 = vmatpush1.msra.mxu0 %v210
    %926 = vmatprep.subr.mxu0 %v213
    %927 = vmatpush1.msra.mxu0 %v212
    %928 = vmatprep.subr.mxu0 %v215
    %929 = vmatpush1.msra.mxu0 %v214
    %930 = vmatprep.subr.mxu0 0.0
    %931 = vmatpush1.msra.mxu0 0.0
    %932 = vmatprep.subr.mxu0 0.0
    %933 = vmatpush1.msra.mxu0 0.0
    %934 = vmatprep.subr.mxu0 0.0
    %935 = vmatpush1.msra.mxu0 0.0
    %936 = vmatprep.subr.mxu0 0.0
    %937 = vmatpush1.msra.mxu0 0.0
    %938 = vmatprep.subr.mxu0 0.0
    %939 = vmatpush1.msra.mxu0 0.0
    %940 = vmatprep.subr.mxu0 0.0
    %941 = vmatpush1.msra.mxu0 0.0
    %942 = vmatprep.subr.mxu0 0.0
    %943 = vmatpush1.msra.mxu0 0.0
    %944 = vmatprep.subr.mxu0 0.0
    %945 = vmatpush1.msra.mxu0 0.0
    %946 = vmatprep.subr.mxu0 0.0
    %947 = vmatpush1.msra.mxu0 0.0
    %948 = vmatprep.subr.mxu0 0.0
    %949 = vmatpush1.msra.mxu0 0.0
    %950 = vmatprep.subr.mxu0 0.0
    %951 = vmatpush1.msra.mxu0 0.0
    %952 = vmatprep.subr.mxu0 0.0
    %953 = vmatpush1.msra.mxu0 0.0
    %954 = vmatprep.subr.mxu0 0.0
    %955 = vmatpush1.msra.mxu0 0.0
    %956 = vmatprep.subr.mxu0 0.0
    %957 = vmatpush1.msra.mxu0 0.0
    %958 = vmatprep.subr.mxu0 0.0
    %959 = vmatpush1.msra.mxu0 0.0
    %960 = vmatprep.subr.mxu0 0.0
    %961 = vmatpush1.msra.mxu0 0.0
    %962 = vmatprep.subr.mxu0 0.0
    %963 = vmatpush1.msra.mxu0 0.0
    %964 = vmatprep.subr.mxu0 0.0
    %965 = vmatpush1.msra.mxu0 0.0
    %966 = vmatprep.subr.mxu0 0.0
    %967 = vmatpush1.msra.mxu0 0.0
    %968 = vmatprep.subr.mxu0 0.0
    %969 = vmatpush1.msra.mxu0 0.0
    %970 = vmatprep.mubr.f32.mxu0 0.0
    %971 = vmatmul.mubr.f32.gmra.mrb[0].mxu0 %v904
    %v972 = vpop.f32.mrb[0].mxu0
    %v973 = vadd.f32 0.0, %v972
    %v974 = vpop.f32.mrb[0].mxu0
    %v975 = vadd.f32 0.0, %v974
    %976 = vdwg.mxu0
    %v977 = vld [vmem:[%s3 + $0x20] sm:$0xff]
    %v978 = vadd.f32 %v975, %v977
    %v979 = vxor.u32 %v978, 2147483648
    %v980 = vmul.f32 %v979, 1.442695
    %v981 = vpow.pop %v980
    %v982 = vadd.f32 %v981, 1.0
    %v983 = vrcp.pop %v982
    %v984 = vmul.f32 1.0, %v983
    %v985 = vtanh.pop %v978
    %v986 = vmul.f32 %v984, %v853
    %988 = vrot.lane.b32.xlu0 %v985, 64
    %v989 = vpop.permute.xlu0 %988
    %v991 = vmul.f32 %v984, %v989
    %993 = vrot.lane.b32.xlu0 %v991, 32
    %v994 = vpop.permute.xlu0 %993
    %v996 = vadd.f32 %v986, %v994
    %v997 = vtanh.pop %v996
    %999 = vrot.lane.b32.xlu0 %v997, 64
    %v1000 = vpop.permute.xlu0 %999
    %v1002 = vmul.f32 %v984, %v1000
    %v1003 = vld [vmem:[#allocation2 + $0x28] sm:$0xff]
    %v1004 = vadd.f32 %v973, %v1003
    %v1005 = vxor.u32 %v1004, 2147483648
    %v1006 = vmul.f32 %v1005, 1.442695
    %v1007 = vpow.pop %v1006
    %v1008 = vadd.f32 %v1007, 1.0
    %v1009 = vrcp.pop %v1008
    %v1010 = vmul.f32 1.0, %v1009
    %v1011 = vtanh.pop %v1004
    %v1012 = vmul.f32 %v1010, %v879
    %1014 = vrot.lane.b32.xlu0 %v1011, 64
    %v1015 = vpop.permute.xlu0 %1014
    %v1017 = vmul.f32 %v1010, %v1015
    %1019 = vrot.lane.b32.xlu0 %v1017, 32
    %v1020 = vpop.permute.xlu0 %1019
    %v1022 = vadd.f32 %v1012, %v1020
    %v1023 = vtanh.pop %v1022
    %1025 = vrot.lane.b32.xlu0 %v1023, 64
    %v1026 = vpop.permute.xlu0 %1025
    %v1028 = vmul.f32 %v1010, %v1026
    %s1029 = sld [smem:[#allocation4 + $0x5]]
    %v1030 = vstv %s1029
    %v1031 = vmul.f32 %v1028, %v1030
    %1033 = vrot.lane.b32.xlu0 %v1028, 32
    %v1034 = vpop.permute.xlu0 %1033
    %1037 = vrot.lane.b32.xlu0 %v1031, 64
    %v1038 = vpop.permute.xlu0 %1037
    %1041 = vrot.lane.b32.xlu0 %v1002, 96
    %v1042 = vpop.permute.xlu0 %1041
    %v1044 = vsel %vm327, %v1034, %v1038
    %v1045 = vsel %vm329, %v1044, %v1042
    %v1047 = vsel %vm216, %v1045, 0
    %1049 = vmatprep.subr.mxu0 %v193
    %1050 = vmatpush1.msra.mxu0 %v192
    %1051 = vmatprep.subr.mxu0 %v195
    %1052 = vmatpush1.msra.mxu0 %v194
    %1053 = vmatprep.subr.mxu0 %v197
    %1054 = vmatpush1.msra.mxu0 %v196
    %1055 = vmatprep.subr.mxu0 %v199
    %1056 = vmatpush1.msra.mxu0 %v198
    %1057 = vmatprep.subr.mxu0 %v201
    %1058 = vmatpush1.msra.mxu0 %v200
    %1059 = vmatprep.subr.mxu0 %v203
    %1060 = vmatpush1.msra.mxu0 %v202
    %1061 = vmatprep.subr.mxu0 %v205
    %1062 = vmatpush1.msra.mxu0 %v204
    %1063 = vmatprep.subr.mxu0 %v207
    %1064 = vmatpush1.msra.mxu0 %v206
    %1065 = vmatprep.subr.mxu0 %v209
    %1066 = vmatpush1.msra.mxu0 %v208
    %1067 = vmatprep.subr.mxu0 %v211
    %1068 = vmatpush1.msra.mxu0 %v210
    %1069 = vmatprep.subr.mxu0 %v213
    %1070 = vmatpush1.msra.mxu0 %v212
    %1071 = vmatprep.subr.mxu0 %v215
    %1072 = vmatpush1.msra.mxu0 %v214
    %1073 = vmatprep.subr.mxu0 0.0
    %1074 = vmatpush1.msra.mxu0 0.0
    %1075 = vmatprep.subr.mxu0 0.0
    %1076 = vmatpush1.msra.mxu0 0.0
    %1077 = vmatprep.subr.mxu0 0.0
    %1078 = vmatpush1.msra.mxu0 0.0
    %1079 = vmatprep.subr.mxu0 0.0
    %1080 = vmatpush1.msra.mxu0 0.0
    %1081 = vmatprep.subr.mxu0 0.0
    %1082 = vmatpush1.msra.mxu0 0.0
    %1083 = vmatprep.subr.mxu0 0.0
    %1084 = vmatpush1.msra.mxu0 0.0
    %1085 = vmatprep.subr.mxu0 0.0
    %1086 = vmatpush1.msra.mxu0 0.0
    %1087 = vmatprep.subr.mxu0 0.0
    %1088 = vmatpush1.msra.mxu0 0.0
    %1089 = vmatprep.subr.mxu0 0.0
    %1090 = vmatpush1.msra.mxu0 0.0
    %1091 = vmatprep.subr.mxu0 0.0
    %1092 = vmatpush1.msra.mxu0 0.0
    %1093 = vmatprep.subr.mxu0 0.0
    %1094 = vmatpush1.msra.mxu0 0.0
    %1095 = vmatprep.subr.mxu0 0.0
    %1096 = vmatpush1.msra.mxu0 0.0
    %1097 = vmatprep.subr.mxu0 0.0
    %1098 = vmatpush1.msra.mxu0 0.0
    %1099 = vmatprep.subr.mxu0 0.0
    %1100 = vmatpush1.msra.mxu0 0.0
    %1101 = vmatprep.subr.mxu0 0.0
    %1102 = vmatpush1.msra.mxu0 0.0
    %1103 = vmatprep.subr.mxu0 0.0
    %1104 = vmatpush1.msra.mxu0 0.0
    %1105 = vmatprep.subr.mxu0 0.0
    %1106 = vmatpush1.msra.mxu0 0.0
    %1107 = vmatprep.subr.mxu0 0.0
    %1108 = vmatpush1.msra.mxu0 0.0
    %1109 = vmatprep.subr.mxu0 0.0
    %1110 = vmatpush1.msra.mxu0 0.0
    %1111 = vmatprep.subr.mxu0 0.0
    %1112 = vmatpush1.msra.mxu0 0.0
    %1113 = vmatprep.mubr.f32.mxu0 0.0
    %1114 = vmatmul.mubr.f32.gmra.mrb[0].mxu0 %v1047
    %v1115 = vpop.f32.mrb[0].mxu0
    %v1116 = vadd.f32 0.0, %v1115
    %v1117 = vpop.f32.mrb[0].mxu0
    %v1118 = vadd.f32 0.0, %v1117
    %1119 = vdwg.mxu0
    %v1120 = vld [vmem:[%s3 + $0x28] sm:$0xff]
    %v1121 = vadd.f32 %v1118, %v1120
    %v1122 = vxor.u32 %v1121, 2147483648
    %v1123 = vmul.f32 %v1122, 1.442695
    %v1124 = vpow.pop %v1123
    %v1125 = vadd.f32 %v1124, 1.0
    %v1126 = vrcp.pop %v1125
    %v1127 = vmul.f32 1.0, %v1126
    %v1128 = vtanh.pop %v1121
    %v1129 = vmul.f32 %v1127, %v996
    %1131 = vrot.lane.b32.xlu0 %v1128, 64
    %v1132 = vpop.permute.xlu0 %1131
    %v1134 = vmul.f32 %v1127, %v1132
    %1136 = vrot.lane.b32.xlu0 %v1134, 32
    %v1137 = vpop.permute.xlu0 %1136
    %v1139 = vadd.f32 %v1129, %v1137
    %v1140 = vtanh.pop %v1139
    %1142 = vrot.lane.b32.xlu0 %v1140, 64
    %v1143 = vpop.permute.xlu0 %1142
    %v1145 = vmul.f32 %v1127, %v1143
    %v1146 = vld [vmem:[#allocation2 + $0x30] sm:$0xff]
    %v1147 = vadd.f32 %v1116, %v1146
    %v1148 = vxor.u32 %v1147, 2147483648
    %v1149 = vmul.f32 %v1148, 1.442695
    %v1150 = vpow.pop %v1149
    %v1151 = vadd.f32 %v1150, 1.0
    %v1152 = vrcp.pop %v1151
    %v1153 = vmul.f32 1.0, %v1152
    %v1154 = vtanh.pop %v1147
    %v1155 = vmul.f32 %v1153, %v1022
    %1157 = vrot.lane.b32.xlu0 %v1154, 64
    %v1158 = vpop.permute.xlu0 %1157
    %v1160 = vmul.f32 %v1153, %v1158
    %1162 = vrot.lane.b32.xlu0 %v1160, 32
    %v1163 = vpop.permute.xlu0 %1162
    %v1165 = vadd.f32 %v1155, %v1163
    %v1166 = vtanh.pop %v1165
    %1168 = vrot.lane.b32.xlu0 %v1166, 64
    %v1169 = vpop.permute.xlu0 %1168
    %v1171 = vmul.f32 %v1153, %v1169
    %s1172 = sld [smem:[#allocation4 + $0x6]]
    %v1173 = vstv %s1172
    %v1174 = vmul.f32 %v1171, %v1173
    %1176 = vrot.lane.b32.xlu0 %v1171, 32
    %v1177 = vpop.permute.xlu0 %1176
    %1180 = vrot.lane.b32.xlu0 %v1174, 64
    %v1181 = vpop.permute.xlu0 %1180
    %1184 = vrot.lane.b32.xlu0 %v1145, 96
    %v1185 = vpop.permute.xlu0 %1184
    %v1187 = vsel %vm327, %v1177, %v1181
    %v1188 = vsel %vm329, %v1187, %v1185
    %v1190 = vsel %vm216, %v1188, 0
    %1192 = vmatprep.subr.mxu0 %v193
    %1193 = vmatpush1.msra.mxu0 %v192
    %1194 = vmatprep.subr.mxu0 %v195
    %1195 = vmatpush1.msra.mxu0 %v194
    %1196 = vmatprep.subr.mxu0 %v197
    %1197 = vmatpush1.msra.mxu0 %v196
    %1198 = vmatprep.subr.mxu0 %v199
    %1199 = vmatpush1.msra.mxu0 %v198
    %1200 = vmatprep.subr.mxu0 %v201
    %1201 = vmatpush1.msra.mxu0 %v200
    %1202 = vmatprep.subr.mxu0 %v203
    %1203 = vmatpush1.msra.mxu0 %v202
    %1204 = vmatprep.subr.mxu0 %v205
    %1205 = vmatpush1.msra.mxu0 %v204
    %1206 = vmatprep.subr.mxu0 %v207
    %1207 = vmatpush1.msra.mxu0 %v206
    %1208 = vmatprep.subr.mxu0 %v209
    %1209 = vmatpush1.msra.mxu0 %v208
    %1210 = vmatprep.subr.mxu0 %v211
    %1211 = vmatpush1.msra.mxu0 %v210
    %1212 = vmatprep.subr.mxu0 %v213
    %1213 = vmatpush1.msra.mxu0 %v212
    %1214 = vmatprep.subr.mxu0 %v215
    %1215 = vmatpush1.msra.mxu0 %v214
    %1216 = vmatprep.subr.mxu0 0.0
    %1217 = vmatpush1.msra.mxu0 0.0
    %1218 = vmatprep.subr.mxu0 0.0
    %1219 = vmatpush1.msra.mxu0 0.0
    %1220 = vmatprep.subr.mxu0 0.0
    %1221 = vmatpush1.msra.mxu0 0.0
    %1222 = vmatprep.subr.mxu0 0.0
    %1223 = vmatpush1.msra.mxu0 0.0
    %1224 = vmatprep.subr.mxu0 0.0
    %1225 = vmatpush1.msra.mxu0 0.0
    %1226 = vmatprep.subr.mxu0 0.0
    %1227 = vmatpush1.msra.mxu0 0.0
    %1228 = vmatprep.subr.mxu0 0.0
    %1229 = vmatpush1.msra.mxu0 0.0
    %1230 = vmatprep.subr.mxu0 0.0
    %1231 = vmatpush1.msra.mxu0 0.0
    %1232 = vmatprep.subr.mxu0 0.0
    %1233 = vmatpush1.msra.mxu0 0.0
    %1234 = vmatprep.subr.mxu0 0.0
    %1235 = vmatpush1.msra.mxu0 0.0
    %1236 = vmatprep.subr.mxu0 0.0
    %1237 = vmatpush1.msra.mxu0 0.0
    %1238 = vmatprep.subr.mxu0 0.0
    %1239 = vmatpush1.msra.mxu0 0.0
    %1240 = vmatprep.subr.mxu0 0.0
    %1241 = vmatpush1.msra.mxu0 0.0
    %1242 = vmatprep.subr.mxu0 0.0
    %1243 = vmatpush1.msra.mxu0 0.0
    %1244 = vmatprep.subr.mxu0 0.0
    %1245 = vmatpush1.msra.mxu0 0.0
    %1246 = vmatprep.subr.mxu0 0.0
    %1247 = vmatpush1.msra.mxu0 0.0
    %1248 = vmatprep.subr.mxu0 0.0
    %1249 = vmatpush1.msra.mxu0 0.0
    %1250 = vmatprep.subr.mxu0 0.0
    %1251 = vmatpush1.msra.mxu0 0.0
    %1252 = vmatprep.subr.mxu0 0.0
    %1253 = vmatpush1.msra.mxu0 0.0
    %1254 = vmatprep.subr.mxu0 0.0
    %1255 = vmatpush1.msra.mxu0 0.0
    %1256 = vmatprep.mubr.f32.mxu0 0.0
    %1257 = vmatmul.mubr.f32.gmra.mrb[0].mxu0 %v1190
    %v1258 = vpop.f32.mrb[0].mxu0
    %v1259 = vadd.f32 0.0, %v1258
    %v1260 = vpop.f32.mrb[0].mxu0
    %v1261 = vadd.f32 0.0, %v1260
    %1262 = vdwg.mxu0
    %v1263 = vld [vmem:[%s3 + $0x30] sm:$0xff]
    %v1264 = vadd.f32 %v1261, %v1263
    %v1265 = vxor.u32 %v1264, 2147483648
    %v1266 = vmul.f32 %v1265, 1.442695
    %v1267 = vpow.pop %v1266
    %v1268 = vadd.f32 %v1267, 1.0
    %v1269 = vrcp.pop %v1268
    %v1270 = vmul.f32 1.0, %v1269
    %v1271 = vtanh.pop %v1264
    %v1272 = vmul.f32 %v1270, %v1139
    %1274 = vrot.lane.b32.xlu0 %v1271, 64
    %v1275 = vpop.permute.xlu0 %1274
    %v1277 = vmul.f32 %v1270, %v1275
    %1279 = vrot.lane.b32.xlu0 %v1277, 32
    %v1280 = vpop.permute.xlu0 %1279
    %v1282 = vadd.f32 %v1272, %v1280
    %v1283 = vtanh.pop %v1282
    %1285 = vrot.lane.b32.xlu0 %v1283, 64
    %v1286 = vpop.permute.xlu0 %1285
    %v1288 = vmul.f32 %v1270, %v1286
    %v1289 = vld [vmem:[#allocation2 + $0x38] sm:$0xff]
    %v1290 = vadd.f32 %v1259, %v1289
    %v1291 = vxor.u32 %v1290, 2147483648
    %v1292 = vmul.f32 %v1291, 1.442695
    %v1293 = vpow.pop %v1292
    %v1294 = vadd.f32 %v1293, 1.0
    %v1295 = vrcp.pop %v1294
    %v1296 = vmul.f32 1.0, %v1295
    %v1297 = vtanh.pop %v1290
    %v1298 = vmul.f32 %v1296, %v1165
    %1300 = vrot.lane.b32.xlu0 %v1297, 64
    %v1301 = vpop.permute.xlu0 %1300
    %v1303 = vmul.f32 %v1296, %v1301
    %1305 = vrot.lane.b32.xlu0 %v1303, 32
    %v1306 = vpop.permute.xlu0 %1305
    %v1308 = vadd.f32 %v1298, %v1306
    %v1309 = vtanh.pop %v1308
    %1311 = vrot.lane.b32.xlu0 %v1309, 64
    %v1312 = vpop.permute.xlu0 %1311
    %v1314 = vmul.f32 %v1296, %v1312
    %s1315 = sld [smem:[#allocation4 + $0x7]]
    %v1316 = vstv %s1315
    %v1317 = vmul.f32 %v1314, %v1316
    %1319 = vrot.lane.b32.xlu0 %v1314, 32
    %v1320 = vpop.permute.xlu0 %1319
    %1323 = vrot.lane.b32.xlu0 %v1317, 64
    %v1324 = vpop.permute.xlu0 %1323
    %1327 = vrot.lane.b32.xlu0 %v1288, 96
    %v1328 = vpop.permute.xlu0 %1327
    %v1330 = vsel %vm327, %v1320, %v1324
    %v1331 = vsel %vm329, %v1330, %v1328
    %v1333 = vsel %vm216, %v1331, 0
    %1335 = vmatprep.subr.mxu0 %v193
    %1336 = vmatpush1.msra.mxu0 %v192
    %1337 = vmatprep.subr.mxu0 %v195
    %1338 = vmatpush1.msra.mxu0 %v194
    %1339 = vmatprep.subr.mxu0 %v197
    %1340 = vmatpush1.msra.mxu0 %v196
    %1341 = vmatprep.subr.mxu0 %v199
    %1342 = vmatpush1.msra.mxu0 %v198
    %1343 = vmatprep.subr.mxu0 %v201
    %1344 = vmatpush1.msra.mxu0 %v200
    %1345 = vmatprep.subr.mxu0 %v203
    %1346 = vmatpush1.msra.mxu0 %v202
    %1347 = vmatprep.subr.mxu0 %v205
    %1348 = vmatpush1.msra.mxu0 %v204
    %1349 = vmatprep.subr.mxu0 %v207
    %1350 = vmatpush1.msra.mxu0 %v206
    %1351 = vmatprep.subr.mxu0 %v209
    %1352 = vmatpush1.msra.mxu0 %v208
    %1353 = vmatprep.subr.mxu0 %v211
    %1354 = vmatpush1.msra.mxu0 %v210
    %1355 = vmatprep.subr.mxu0 %v213
    %1356 = vmatpush1.msra.mxu0 %v212
    %1357 = vmatprep.subr.mxu0 %v215
    %1358 = vmatpush1.msra.mxu0 %v214
    %1359 = vmatprep.subr.mxu0 0.0
    %1360 = vmatpush1.msra.mxu0 0.0
    %1361 = vmatprep.subr.mxu0 0.0
    %1362 = vmatpush1.msra.mxu0 0.0
    %1363 = vmatprep.subr.mxu0 0.0
    %1364 = vmatpush1.msra.mxu0 0.0
    %1365 = vmatprep.subr.mxu0 0.0
    %1366 = vmatpush1.msra.mxu0 0.0
    %1367 = vmatprep.subr.mxu0 0.0
    %1368 = vmatpush1.msra.mxu0 0.0
    %1369 = vmatprep.subr.mxu0 0.0
    %1370 = vmatpush1.msra.mxu0 0.0
    %1371 = vmatprep.subr.mxu0 0.0
    %1372 = vmatpush1.msra.mxu0 0.0
    %1373 = vmatprep.subr.mxu0 0.0
    %1374 = vmatpush1.msra.mxu0 0.0
    %1375 = vmatprep.subr.mxu0 0.0
    %1376 = vmatpush1.msra.mxu0 0.0
    %1377 = vmatprep.subr.mxu0 0.0
    %1378 = vmatpush1.msra.mxu0 0.0
    %1379 = vmatprep.subr.mxu0 0.0
    %1380 = vmatpush1.msra.mxu0 0.0
    %1381 = vmatprep.subr.mxu0 0.0
    %1382 = vmatpush1.msra.mxu0 0.0
    %1383 = vmatprep.subr.mxu0 0.0
    %1384 = vmatpush1.msra.mxu0 0.0
    %1385 = vmatprep.subr.mxu0 0.0
    %1386 = vmatpush1.msra.mxu0 0.0
    %1387 = vmatprep.subr.mxu0 0.0
    %1388 = vmatpush1.msra.mxu0 0.0
    %1389 = vmatprep.subr.mxu0 0.0
    %1390 = vmatpush1.msra.mxu0 0.0
    %1391 = vmatprep.subr.mxu0 0.0
    %1392 = vmatpush1.msra.mxu0 0.0
    %1393 = vmatprep.subr.mxu0 0.0
    %1394 = vmatpush1.msra.mxu0 0.0
    %1395 = vmatprep.subr.mxu0 0.0
    %1396 = vmatpush1.msra.mxu0 0.0
    %1397 = vmatprep.subr.mxu0 0.0
    %1398 = vmatpush1.msra.mxu0 0.0
    %1399 = vmatprep.mubr.f32.mxu0 0.0
    %1400 = vmatmul.mubr.f32.gmra.mrb[0].mxu0 %v1333
    %v1401 = vpop.f32.mrb[0].mxu0
    %v1402 = vpop.f32.mrb[0].mxu0
    %v1403 = vadd.f32 0.0, %v1402
    %1404 = vdwg.mxu0
    %v1405 = vld [vmem:[%s3 + $0x38] sm:$0xff]
    %v1406 = vadd.f32 %v1403, %v1405
    %v1407 = vxor.u32 %v1406, 2147483648
    %v1408 = vmul.f32 %v1407, 1.442695
    %v1409 = vpow.pop %v1408
    %v1410 = vadd.f32 %v1409, 1.0
    %v1411 = vrcp.pop %v1410
    %v1412 = vmul.f32 1.0, %v1411
    %v1413 = vtanh.pop %v1406
    %v1414 = vmul.f32 %v1412, %v1282
    %1416 = vrot.lane.b32.xlu0 %v1413, 64
    %v1417 = vpop.permute.xlu0 %1416
    %v1419 = vmul.f32 %v1412, %v1417
    %1421 = vrot.lane.b32.xlu0 %v1419, 32
    %v1422 = vpop.permute.xlu0 %1421
    %v1424 = vadd.f32 %v1414, %v1422
    %v1425 = vtanh.pop %v1424
    %1427 = vrot.lane.b32.xlu0 %v1425, 64
    %v1428 = vpop.permute.xlu0 %1427
    %v1430 = vmul.f32 %v1412, %v1428
    %v1431 = vld [vmem:[%s5] sm:$0xff]
    %v1432 = vld [vmem:[%s5 + $0x8] sm:$0xff]
    %v1433 = vld [vmem:[%s5 + $0x10] sm:$0xff]
    %v1434 = vld [vmem:[%s5 + $0x18] sm:$0xff]
    %s1435 = sld [smem:[#allocation3]]
    %v1436 = vstv %s1435
    %1438 = vrot.lane.b32.xlu0 %v1430, 32
    %v1439 = vpop.permute.xlu0 %1438
    %v1440 = vsel %vm327, %v1439, 0
    %1442 = vmatprep.subr.mxu0 0.0
    %1443 = vmatpush1.msra.mxu0 %v1431
    %1444 = vmatprep.subr.mxu0 0.0
    %1445 = vmatpush1.msra.mxu0 %v1432
    %1446 = vmatprep.subr.mxu0 0.0
    %1447 = vmatpush1.msra.mxu0 %v1433
    %1448 = vmatprep.subr.mxu0 0.0
    %1449 = vmatpush1.msra.mxu0 %v1434
    %1450 = vmatprep.subr.mxu0 0.0
    %1451 = vmatpush1.msra.mxu0 0.0
    %1452 = vmatprep.subr.mxu0 0.0
    %1453 = vmatpush1.msra.mxu0 0.0
    %1454 = vmatprep.subr.mxu0 0.0
    %1455 = vmatpush1.msra.mxu0 0.0
    %1456 = vmatprep.subr.mxu0 0.0
    %1457 = vmatpush1.msra.mxu0 0.0
    %1458 = vmatprep.subr.mxu0 0.0
    %1459 = vmatpush1.msra.mxu0 0.0
    %1460 = vmatprep.subr.mxu0 0.0
    %1461 = vmatpush1.msra.mxu0 0.0
    %1462 = vmatprep.subr.mxu0 0.0
    %1463 = vmatpush1.msra.mxu0 0.0
    %1464 = vmatprep.subr.mxu0 0.0
    %1465 = vmatpush1.msra.mxu0 0.0
    %1466 = vmatprep.subr.mxu0 0.0
    %1467 = vmatpush1.msra.mxu0 0.0
    %1468 = vmatprep.subr.mxu0 0.0
    %1469 = vmatpush1.msra.mxu0 0.0
    %1470 = vmatprep.subr.mxu0 0.0
    %1471 = vmatpush1.msra.mxu0 0.0
    %1472 = vmatprep.subr.mxu0 0.0
    %1473 = vmatpush1.msra.mxu0 0.0
    %1474 = vmatprep.subr.mxu0 0.0
    %1475 = vmatpush1.msra.mxu0 0.0
    %1476 = vmatprep.subr.mxu0 0.0
    %1477 = vmatpush1.msra.mxu0 0.0
    %1478 = vmatprep.subr.mxu0 0.0
    %1479 = vmatpush1.msra.mxu0 0.0
    %1480 = vmatprep.subr.mxu0 0.0
    %1481 = vmatpush1.msra.mxu0 0.0
    %1482 = vmatprep.subr.mxu0 0.0
    %1483 = vmatpush1.msra.mxu0 0.0
    %1484 = vmatprep.subr.mxu0 0.0
    %1485 = vmatpush1.msra.mxu0 0.0
    %1486 = vmatprep.subr.mxu0 0.0
    %1487 = vmatpush1.msra.mxu0 0.0
    %1488 = vmatprep.subr.mxu0 0.0
    %1489 = vmatpush1.msra.mxu0 0.0
    %1490 = vmatprep.subr.mxu0 0.0
    %1491 = vmatpush1.msra.mxu0 0.0
    %1492 = vmatprep.subr.mxu0 0.0
    %1493 = vmatpush1.msra.mxu0 0.0
    %1494 = vmatprep.subr.mxu0 0.0
    %1495 = vmatpush1.msra.mxu0 0.0
    %1496 = vmatprep.subr.mxu0 0.0
    %1497 = vmatpush1.msra.mxu0 0.0
    %1498 = vmatprep.subr.mxu0 0.0
    %1499 = vmatpush1.msra.mxu0 0.0
    %1500 = vmatprep.subr.mxu0 0.0
    %1501 = vmatpush1.msra.mxu0 0.0
    %1502 = vmatprep.subr.mxu0 0.0
    %1503 = vmatpush1.msra.mxu0 0.0
    %1504 = vmatprep.subr.mxu0 0.0
    %1505 = vmatpush1.msra.mxu0 0.0
    %1506 = vmatprep.mubr.f32.mxu0 0.0
    %1507 = vmatmul.mubr.f32.gmra.mrb[0].mxu0 %v1440
    %v1508 = vpop.f32.mrb[0].mxu0
    %v1509 = vadd.f32 %v1436, %v1508
    %v1510 = vpop.f32.mrb[0].mxu0
    %1511 = vdwg.mxu0
    %vm1512 = vcmask 7168
    %1513 = vst.msk [vmem:[%s7] sm:$0xff] %vm1512, %v1509
    // Predicated region
    $region34: #{lstm_simple_forward.1} parent=1 // pred_check
      _
    $region35: #{lstm_simple_forward.1} parent=1 // pred_check_branch
      %1515 = sbr.rel (0) target = $region37
    $region36: #{lstm_simple_forward.1} parent=1 // pred_region
      _
    $region37: #{lstm_simple_forward.1} parent=1 // pred_fallthru
      _
    // Predicated region
    $region38: #{lstm_simple_forward.1} parent=1 // pred_check
      _
    $region39: #{lstm_simple_forward.1} parent=1 // pred_check_branch
      %1517 = sbr.rel (0) target = $region41
    $region40: #{lstm_simple_forward.1} parent=1 // pred_region
      _
    $region41: #{lstm_simple_forward.1} parent=1 // pred_fallthru
      _
    %1518 = vsyncpa [#allocation5], 1

</llo_original>
